<compile_context>
chip_gen: v5e
topology: v5e:2x2
jax: 0.10.0
libtpu: 0.0.40
codegen_flags: <defaults>
</compile_context>

<pallas_src>
import math
from functools import partial

import jax
import jax.numpy as jnp
from jax.experimental import pallas as pl
from jax.experimental.pallas import tpu as pltpu


def _round_up(x, m):
  return ((x + m - 1) // m) * m


# ----------------------------- fused Pallas kernel -----------------------------

def _fused_encoder_kernel(
    x_ref,
    emb_w_ref, emb_b_ref,
    wqkv_ref, bqkv_ref,
    wo_ref, bo_ref,
    g1_ref, beta1_ref,
    w1_ref, bf1_ref, w2_ref, bf2_ref,
    g2_ref, beta2_ref,
    wp_ref, bp_ref, wd_ref, bd_ref,
    lat_ref, dec_ref,
    *, nhead, eps=1e-5):
  """Whole TransformerDimReducer forward for a block of Bt batch elements, all in VMEM."""
  f32 = jnp.float32
  cdt = wqkv_ref.dtype                      # MXU operand dtype (bf16 by default; f32 also ok)

  bt, seq, d_in = x_ref.shape
  hidden = emb_w_ref.shape[1]
  hd = hidden // nhead
  m = bt * seq                              # rows fed to every dense matmul (= Bt * S)

  # ---- embedding: one (M, D_in) x (D_in, H) MXU matmul ----
  xm = x_ref[...].reshape(m, d_in).astype(cdt)
  h = jnp.dot(xm, emb_w_ref[...], preferred_element_type=f32) + emb_b_ref[...]   # (M, H) f32

  # ---- fused QKV: one (M, H) x (H, 3H) matmul (1/sqrt(hd) already folded into Wq/bq) ----
  qkv = jnp.dot(h.astype(cdt), wqkv_ref[...], preferred_element_type=f32) + bqkv_ref[...]
  qkv = qkv.reshape(bt, seq, 3 * hidden)

  # ---- self-attention: per-head scores/context, batched over the Bt batch block ----
  # head_dim-sized contractions are inherent to MHA; heads are statically unrolled and
  # sliced straight out of the packed QKV result (no broadcast of h, no per-head weights).
  ctx_heads = []
  for hh in range(nhead):
    q_h = qkv[:, :, hh * hd:(hh + 1) * hd].astype(cdt)                          # (Bt, S, hd)
    k_h = qkv[:, :, hidden + hh * hd: hidden + (hh + 1) * hd].astype(cdt)
    v_h = qkv[:, :, 2 * hidden + hh * hd: 2 * hidden + (hh + 1) * hd].astype(cdt)
    s = jax.lax.dot_general(q_h, k_h, (((2,), (2,)), ((0,), (0,))),
                            preferred_element_type=f32)                         # (Bt, S, S)
    s = s - jnp.max(s, axis=-1, keepdims=True)                                  # f32 softmax
    p = jnp.exp(s)
    p = p * pl.reciprocal(jnp.sum(p, axis=-1, keepdims=True), approx=True)
    ctx_heads.append(
        jax.lax.dot_general(p.astype(cdt), v_h, (((2,), (1,)), ((0,), (0,))),
                            preferred_element_type=f32))                        # (Bt, S, hd)
  # TODO(synk): for large S, tile this flash-style over KV blocks (running max/sum) instead
  # of materializing the full (S, S) scores — matters for v7x's 64 MiB VMEM.
  ctx = jnp.concatenate(ctx_heads, axis=-1).reshape(m, hidden)                  # (M, H)

  # ---- out_proj: one (M, H) x (H, H) full-K matmul (no cross-head sum) ----
  attn = jnp.dot(ctx.astype(cdt), wo_ref[...], preferred_element_type=f32) + bo_ref[...]

  def layer_norm(t, g, b):                  # f32 elementwise (v5e VPU/EUP have no bf16)
    mu = jnp.mean(t, axis=-1, keepdims=True)
    c = t - mu
    var = jnp.mean(c * c, axis=-1, keepdims=True)
    return c * jax.lax.rsqrt(var + eps) * g + b

  # TODO(synk): nn.Dropout (p=0.1, train-mode only) omitted — identity in eval mode.
  h1 = layer_norm(h + attn, g1_ref[...], beta1_ref[...])

  # ---- feed-forward (relu) ----
  ff = jnp.dot(h1.astype(cdt), w1_ref[...], preferred_element_type=f32) + bf1_ref[...]
  ff = jnp.maximum(ff, 0.0)
  ff = jnp.dot(ff.astype(cdt), w2_ref[...], preferred_element_type=f32) + bf2_ref[...]
  h2 = layer_norm(h1 + ff, g2_ref[...], beta2_ref[...])

  # ---- projector (lane-padded latent stays in VMEM) and decoder (lane-dense output) ----
  latent = jnp.dot(h2.astype(cdt), wp_ref[...], preferred_element_type=f32) + bp_ref[...]
  decoded = jnp.dot(latent.astype(cdt), wd_ref[...], preferred_element_type=f32) + bd_ref[...]

  # ---- store directly in the module's (S, B, .) output layout (no wrapper transpose) ----
  lat_dim = lat_ref.shape[-1]
  latent3 = latent.reshape(bt, seq, latent.shape[-1])
  decoded3 = decoded.reshape(bt, seq, decoded.shape[-1])
  for b in range(bt):                       # static unroll; static-slice stores only
    lat_ref[:, b:b + 1, :] = latent3[b, :, :lat_dim][:, None, :]
    dec_ref[:, b:b + 1, :] = decoded3[b][:, None, :]


# ----------------------------- one-time host-side prep -----------------------------

def _prepare_weights(params, nhead, compute_dtype):
  """One-time weight layout prep (hoisted out of the per-call forward path)."""
  f32 = jnp.float32
  hidden, d_in = params["emb_w"].shape
  head_dim = hidden // nhead
  lat = params["proj_w"].shape[0]
  ff = params["lin1_w"].shape[0]
  lat_pad = _round_up(lat, 128)
  d_pad = _round_up(d_in, 128)
  cdt = compute_dtype

  # fused QKV weight (H, 3H) with columns ordered [q | k | v]; fold the 1/sqrt(head_dim)
  # softmax scale into the q columns (weights AND bias) so the kernel does no extra q*scale.
  scale = 1.0 / math.sqrt(head_dim)
  col_scale = jnp.concatenate(
      [jnp.full((hidden,), scale, f32), jnp.ones((2 * hidden,), f32)])
  wqkv = params["in_proj_w"].astype(f32).T * col_scale[None, :]
  bqkv = params["in_proj_b"].astype(f32).reshape(1, 3 * hidden) * col_scale[None, :]

  # projector padded to a lane-dense slab; decoder consumes the padded latent and emits a
  # lane-dense (multiple-of-128) reconstruction (padded columns are exactly zero).
  wp = jnp.zeros((hidden, lat_pad), f32).at[:, :lat].set(params["proj_w"].T)
  bp = jnp.zeros((1, lat_pad), f32).at[:, :lat].set(params["proj_b"])
  wd = jnp.zeros((lat_pad, d_pad), f32).at[:lat, :d_in].set(params["dec_w"].T)
  bd = jnp.zeros((1, d_pad), f32).at[:, :d_in].set(params["dec_b"])

  weights = (
      params["emb_w"].T.astype(cdt),                       # (D_in, H)
      params["emb_b"].reshape(1, hidden).astype(f32),
      wqkv.astype(cdt), bqkv,                               # (H, 3H), (1, 3H)
      params["out_proj_w"].T.astype(cdt),                   # (H, H)
      params["out_proj_b"].reshape(1, hidden).astype(f32),
      params["norm1_g"].reshape(1, hidden).astype(f32),
      params["norm1_b"].reshape(1, hidden).astype(f32),
      params["lin1_w"].T.astype(cdt),                       # (H, FF)
      params["lin1_b"].reshape(1, ff).astype(f32),
      params["lin2_w"].T.astype(cdt),                       # (FF, H)
      params["lin2_b"].reshape(1, hidden).astype(f32),
      params["norm2_g"].reshape(1, hidden).astype(f32),
      params["norm2_b"].reshape(1, hidden).astype(f32),
      wp.astype(cdt), bp,                                    # (H, LAT_PAD), (1, LAT_PAD)
      wd.astype(cdt), bd,                                    # (LAT_PAD, D_PAD), (1, D_PAD)
  )
  cfg = dict(hidden=hidden, d_in=d_in, head_dim=head_dim, lat=lat,
             lat_pad=lat_pad, d_pad=d_pad, ff=ff, nhead=nhead)
  return weights, cfg


def _pick_batch_tile(batch, seq, target_rows=128):
  """Batch elements per grid step. Bt must divide B and (Bt == B or Bt % 8 == 0) so the
  seq-major (S, Bt, .) output blocks satisfy the TPU (8, 128) block-shape rule."""
  best = batch
  for bt in range(1, batch + 1):
    if batch % bt or (bt != batch and bt % 8):
      continue
    best = bt
    if bt * seq >= target_rows:
      break
  return best


def _vmem_limit_bytes(weights, bt, seq, cfg):
  """Explicit VMEM budget from weight + activation footprint (with headroom)."""
  weight_bytes = sum(int(w.size) * w.dtype.itemsize for w in weights)
  m = bt * seq
  act_bytes = 4 * m * (cfg["d_in"] + 6 * cfg["hidden"] + cfg["ff"]
                       + cfg["lat_pad"] + cfg["d_pad"] + cfg["nhead"] * seq)
  io_bytes = 4 * m * (cfg["d_in"] + cfg["lat"] + cfg["d_pad"])
  need = 2 * weight_bytes + 2 * io_bytes + 2 * act_bytes + (4 << 20)
  return int(min(64 << 20, max(32 << 20, need)))


# ----------------------------- wrapper -----------------------------

def build_transformer_dim_reducer(params, *, nhead, compute_dtype=jnp.bfloat16):
  """Returns a forward(x) callable. Weight prep is done once here, not per call.
  Pass compute_dtype=jnp.float32 for bit-closer parity with an f32 reference."""
  weights, cfg = _prepare_weights(params, nhead, compute_dtype)
  kernel = partial(_fused_encoder_kernel, nhead=nhead)

  @jax.jit
  def _fwd(x, *ws):
    batch, seq, d_in = x.shape
    if d_in != cfg["d_in"]:
      raise ValueError(f"expected input_dim={cfg['d_in']}, got {d_in}")
    bt = _pick_batch_tile(batch, seq)

    def invariant_spec(w):              # grid-invariant block: weight loaded once
      zeros = (0,) * w.ndim
      return pl.BlockSpec(w.shape, lambda b: zeros)

    lat_out, dec_out = pl.pallas_call(
        kernel,
        out_shape=(jax.ShapeDtypeStruct((seq, batch, cfg["lat"]), jnp.float32),
                   jax.ShapeDtypeStruct((seq, batch, cfg["d_pad"]), jnp.float32)),
        grid=(batch // bt,),
        in_specs=[pl.BlockSpec((bt, seq, d_in), lambda b: (b, 0, 0))]
                 + [invariant_spec(w) for w in ws],
        out_specs=(pl.BlockSpec((seq, bt, cfg["lat"]), lambda b: (0, b, 0)),
                   pl.BlockSpec((seq, bt, cfg["d_pad"]), lambda b: (0, b, 0))),
        compiler_params=pltpu.CompilerParams(
            dimension_semantics=("parallel",),
            vmem_limit_bytes=_vmem_limit_bytes(ws, bt, seq, cfg)),
    )(x, *ws)

    # decoded is emitted lane-dense; slice only when input_dim is not 128-aligned.
    decoded = dec_out if cfg["d_pad"] == d_in else dec_out[..., :d_in]
    latent = lat_out
    if seq == 1:                         # mirror PyTorch's encoded.squeeze(0)
      latent, decoded = latent[0], decoded[0]
    return latent, decoded

  def forward(x):
    return _fwd(x, *weights)

  return forward


# ----------------------------- parameters -----------------------------

def init_params(key, input_dim, hidden_dim, latent_dim, nhead, dim_ff):
  ks = jax.random.split(key, 14)
  f = lambda k, shape: jax.random.normal(k, shape, jnp.float32) * 0.1
  p = {}
  p["emb_w"] = f(ks[0], (hidden_dim, input_dim));          p["emb_b"] = f(ks[1], (hidden_dim,))
  p["in_proj_w"] = f(ks[2], (3 * hidden_dim, hidden_dim)); p["in_proj_b"] = f(ks[3], (3 * hidden_dim,))
  p["out_proj_w"] = f(ks[4], (hidden_dim, hidden_dim));    p["out_proj_b"] = f(ks[5], (hidden_dim,))
  p["lin1_w"] = f(ks[6], (dim_ff, hidden_dim));            p["lin1_b"] = f(ks[7], (dim_ff,))
  p["lin2_w"] = f(ks[8], (hidden_dim, dim_ff));            p["lin2_b"] = f(ks[9], (hidden_dim,))
  p["norm1_g"] = jnp.ones((hidden_dim,), jnp.float32);     p["norm1_b"] = jnp.zeros((hidden_dim,), jnp.float32)
  p["norm2_g"] = jnp.ones((hidden_dim,), jnp.float32);     p["norm2_b"] = jnp.zeros((hidden_dim,), jnp.float32)
  p["proj_w"] = f(ks[10], (latent_dim, hidden_dim));       p["proj_b"] = f(ks[11], (latent_dim,))
  p["dec_w"] = f(ks[12], (input_dim, latent_dim));         p["dec_b"] = f(ks[13], (input_dim,))
  return p


# ----------------------------- pure-JAX reference -----------------------------

def reference_forward(params, x, *, nhead):
  B, S, D_in = x.shape
  H = params["emb_w"].shape[0]
  hd = H // nhead
  lin = lambda t, w, b: t @ w.T + b

  h = lin(x, params["emb_w"], params["emb_b"])
  qkv = lin(h, params["in_proj_w"], params["in_proj_b"])
  q, k, v = jnp.split(qkv, 3, axis=-1)
  heads = lambda t: t.reshape(B, S, nhead, hd).transpose(0, 2, 1, 3)
  qh, kh, vh = heads(q), heads(k), heads(v)
  s = jnp.einsum("bhqd,bhkd->bhqk", qh, kh) / math.sqrt(hd)
  p = jax.nn.softmax(s, axis=-1)
  a = jnp.einsum("bhqk,bhkd->bhqd", p, vh).transpose(0, 2, 1, 3).reshape(B, S, H)
  a = lin(a, params["out_proj_w"], params["out_proj_b"])

  def ln(t, g, be):
    m = t.mean(-1, keepdims=True)
    var = ((t - m) ** 2).mean(-1, keepdims=True)
    return (t - m) / jnp.sqrt(var + 1e-5) * g + be

  h = ln(h + a, params["norm1_g"], params["norm1_b"])
  ff = jnp.maximum(lin(h, params["lin1_w"], params["lin1_b"]), 0.0)
  ff = lin(ff, params["lin2_w"], params["lin2_b"])
  h = ln(h + ff, params["norm2_g"], params["norm2_b"])

  latent = lin(h, params["proj_w"], params["proj_b"])
  decoded = lin(latent, params["dec_w"], params["dec_b"])
  latent = latent.transpose(1, 0, 2)
  decoded = decoded.transpose(1, 0, 2)
  if S == 1:
    latent, decoded = latent[0], decoded[0]
  return latent, decoded


# ----------------------------- main -----------------------------

if __name__ == "__main__":
  # small shapes consistent with the module (input_dim, hidden_dim, latent_dim, nhead, dim_ff)
  B, S, D_IN, HID, LAT, NHEAD, FF = 2, 8, 32, 32, 2, 4, 64

  key = jax.random.PRNGKey(0)
  kp, kx = jax.random.split(key)
  params = init_params(kp, D_IN, HID, LAT, NHEAD, FF)
  x = jax.random.normal(kx, (B, S, D_IN), jnp.float32)

  forward = build_transformer_dim_reducer(params, nhead=NHEAD)
  latent, decoded = forward(x)
  jax.block_until_ready((latent, decoded))

  ref_lat, ref_dec = reference_forward(params, x, nhead=NHEAD)
  assert latent.shape == ref_lat.shape and decoded.shape == ref_dec.shape
  assert jnp.allclose(latent, ref_lat, atol=5e-2, rtol=5e-2)
  assert jnp.allclose(decoded, ref_dec, atol=5e-2, rtol=5e-2)

  print("KERNEL_OK")
</pallas_src>

<mosaic_0001>
module attributes {stable_mosaic.version = 11 : i64} {
  func.func @_fused_encoder_kernel(%arg0: i32, %arg1: memref<2x8x32xf32, #tpu.memory_space<vmem>>, %arg2: memref<32x32xbf16, #tpu.memory_space<vmem>>, %arg3: memref<1x32xf32, #tpu.memory_space<vmem>>, %arg4: memref<32x96xbf16, #tpu.memory_space<vmem>>, %arg5: memref<1x96xf32, #tpu.memory_space<vmem>>, %arg6: memref<32x32xbf16, #tpu.memory_space<vmem>>, %arg7: memref<1x32xf32, #tpu.memory_space<vmem>>, %arg8: memref<1x32xf32, #tpu.memory_space<vmem>>, %arg9: memref<1x32xf32, #tpu.memory_space<vmem>>, %arg10: memref<32x64xbf16, #tpu.memory_space<vmem>>, %arg11: memref<1x64xf32, #tpu.memory_space<vmem>>, %arg12: memref<64x32xbf16, #tpu.memory_space<vmem>>, %arg13: memref<1x32xf32, #tpu.memory_space<vmem>>, %arg14: memref<1x32xf32, #tpu.memory_space<vmem>>, %arg15: memref<1x32xf32, #tpu.memory_space<vmem>>, %arg16: memref<32x128xbf16, #tpu.memory_space<vmem>>, %arg17: memref<1x128xf32, #tpu.memory_space<vmem>>, %arg18: memref<128x128xbf16, #tpu.memory_space<vmem>>, %arg19: memref<1x128xf32, #tpu.memory_space<vmem>>, %arg20: memref<8x2x2xf32, #tpu.memory_space<vmem>>, %arg21: memref<8x2x128xf32, #tpu.memory_space<vmem>>) attributes {dimension_semantics = [#tpu.dimension_semantics<parallel>], iteration_bounds = array<i64: 1>, scalar_prefetch = 0 : i64, scratch_operands = 0 : i64, tpu.core_type = #tpu.core_type<tc>, window_params = [{transform_indices = @transform_0, window_bounds = array<i64: 2, 8, 32>}, {pipeline_mode = #tpu.pipeline_mode<synchronous>, transform_indices = @transform_1, window_bounds = array<i64: 32, 32>}, {pipeline_mode = #tpu.pipeline_mode<synchronous>, transform_indices = @transform_2, window_bounds = array<i64: 1, 32>}, {pipeline_mode = #tpu.pipeline_mode<synchronous>, transform_indices = @transform_3, window_bounds = array<i64: 32, 96>}, {pipeline_mode = #tpu.pipeline_mode<synchronous>, transform_indices = @transform_4, window_bounds = array<i64: 1, 96>}, {pipeline_mode = #tpu.pipeline_mode<synchronous>, transform_indices = @transform_5, window_bounds = array<i64: 32, 32>}, {pipeline_mode = #tpu.pipeline_mode<synchronous>, transform_indices = @transform_6, window_bounds = array<i64: 1, 32>}, {pipeline_mode = #tpu.pipeline_mode<synchronous>, transform_indices = @transform_7, window_bounds = array<i64: 1, 32>}, {pipeline_mode = #tpu.pipeline_mode<synchronous>, transform_indices = @transform_8, window_bounds = array<i64: 1, 32>}, {pipeline_mode = #tpu.pipeline_mode<synchronous>, transform_indices = @transform_9, window_bounds = array<i64: 32, 64>}, {pipeline_mode = #tpu.pipeline_mode<synchronous>, transform_indices = @transform_10, window_bounds = array<i64: 1, 64>}, {pipeline_mode = #tpu.pipeline_mode<synchronous>, transform_indices = @transform_11, window_bounds = array<i64: 64, 32>}, {pipeline_mode = #tpu.pipeline_mode<synchronous>, transform_indices = @transform_12, window_bounds = array<i64: 1, 32>}, {pipeline_mode = #tpu.pipeline_mode<synchronous>, transform_indices = @transform_13, window_bounds = array<i64: 1, 32>}, {pipeline_mode = #tpu.pipeline_mode<synchronous>, transform_indices = @transform_14, window_bounds = array<i64: 1, 32>}, {pipeline_mode = #tpu.pipeline_mode<synchronous>, transform_indices = @transform_15, window_bounds = array<i64: 32, 128>}, {pipeline_mode = #tpu.pipeline_mode<synchronous>, transform_indices = @transform_16, window_bounds = array<i64: 1, 128>}, {pipeline_mode = #tpu.pipeline_mode<synchronous>, transform_indices = @transform_17, window_bounds = array<i64: 128, 128>}, {pipeline_mode = #tpu.pipeline_mode<synchronous>, transform_indices = @transform_18, window_bounds = array<i64: 1, 128>}, {transform_indices = @transform_19, window_bounds = array<i64: 8, 2, 2>}, {transform_indices = @transform_20, window_bounds = array<i64: 8, 2, 128>}]} {
    %c0 = arith.constant 0 : index
    %c0_0 = arith.constant 0 : index
    %c0_1 = arith.constant 0 : index
    %0 = vector.load %arg1[%c0, %c0_0, %c0_1] : memref<2x8x32xf32, #tpu.memory_space<vmem>>, vector<2x8x32xf32>
    %1 = vector.shape_cast %0 : vector<2x8x32xf32> to vector<16x32xf32>
    %2 = arith.truncf %1 : vector<16x32xf32> to vector<16x32xbf16>
    %c0_2 = arith.constant 0 : index
    %c0_3 = arith.constant 0 : index
    %3 = vector.load %arg2[%c0_2, %c0_3] : memref<32x32xbf16, #tpu.memory_space<vmem>>, vector<32x32xbf16>
    %cst = arith.constant dense<0.000000e+00> : vector<16x32xf32>
    %4 = tpu.matmul %2, %3, %cst {dimension_numbers = #tpu.dot_dimension_numbers<[1], [0], [0], [1], [0, 0, 1, 1], [], []>} : vector<16x32xbf16>, vector<32x32xbf16>, vector<16x32xf32> -> vector<16x32xf32>
    %c0_4 = arith.constant 0 : index
    %c0_5 = arith.constant 0 : index
    %5 = vector.load %arg3[%c0_4, %c0_5] : memref<1x32xf32, #tpu.memory_space<vmem>>, vector<1x32xf32>
    %6 = vector.broadcast %5 : vector<1x32xf32> to vector<16x32xf32>
    %7 = arith.addf %4, %6 : vector<16x32xf32>
    %8 = arith.truncf %7 : vector<16x32xf32> to vector<16x32xbf16>
    %c0_6 = arith.constant 0 : index
    %c0_7 = arith.constant 0 : index
    %9 = vector.load %arg4[%c0_6, %c0_7] : memref<32x96xbf16, #tpu.memory_space<vmem>>, vector<32x96xbf16>
    %cst_8 = arith.constant dense<0.000000e+00> : vector<16x96xf32>
    %10 = tpu.matmul %8, %9, %cst_8 {dimension_numbers = #tpu.dot_dimension_numbers<[1], [0], [0], [1], [0, 0, 1, 1], [], []>} : vector<16x32xbf16>, vector<32x96xbf16>, vector<16x96xf32> -> vector<16x96xf32>
    %c0_9 = arith.constant 0 : index
    %c0_10 = arith.constant 0 : index
    %11 = vector.load %arg5[%c0_9, %c0_10] : memref<1x96xf32, #tpu.memory_space<vmem>>, vector<1x96xf32>
    %12 = vector.broadcast %11 : vector<1x96xf32> to vector<16x96xf32>
    %13 = arith.addf %10, %12 : vector<16x96xf32>
    %14 = vector.shape_cast %13 : vector<16x96xf32> to vector<2x8x96xf32>
    %15 = vector.extract_strided_slice %14 {offsets = [0, 0, 0], sizes = [2, 8, 8], strides = [1, 1, 1]} : vector<2x8x96xf32> to vector<2x8x8xf32>
    %16 = arith.truncf %15 : vector<2x8x8xf32> to vector<2x8x8xbf16>
    %17 = vector.extract_strided_slice %14 {offsets = [0, 0, 32], sizes = [2, 8, 8], strides = [1, 1, 1]} : vector<2x8x96xf32> to vector<2x8x8xf32>
    %18 = arith.truncf %17 : vector<2x8x8xf32> to vector<2x8x8xbf16>
    %19 = vector.extract_strided_slice %14 {offsets = [0, 0, 64], sizes = [2, 8, 8], strides = [1, 1, 1]} : vector<2x8x96xf32> to vector<2x8x8xf32>
    %20 = arith.truncf %19 : vector<2x8x8xf32> to vector<2x8x8xbf16>
    %cst_11 = arith.constant dense<0.000000e+00> : vector<2x8x8xf32>
    %21 = tpu.matmul %16, %18, %cst_11 {dimension_numbers = #tpu.dot_dimension_numbers<[2], [2], [1], [1], [0, 0, 0, 1, 1, 1], [0], [0]>} : vector<2x8x8xbf16>, vector<2x8x8xbf16>, vector<2x8x8xf32> -> vector<2x8x8xf32>
    %cst_12 = arith.constant dense<0xFF800000> : vector<2x8xf32>
    %22 = vector.multi_reduction <maximumf>, %21, %cst_12 [2] : vector<2x8x8xf32> to vector<2x8xf32>
    %23 = vector.shape_cast %22 : vector<2x8xf32> to vector<2x8x1xf32>
    %24 = vector.broadcast %23 : vector<2x8x1xf32> to vector<2x8x8xf32>
    %25 = arith.subf %21, %24 : vector<2x8x8xf32>
    %26 = math.exp %25 : vector<2x8x8xf32>
    %cst_13 = arith.constant dense<0.000000e+00> : vector<2x8xf32>
    %27 = vector.multi_reduction <add>, %26, %cst_13 [2] : vector<2x8x8xf32> to vector<2x8xf32>
    %28 = vector.shape_cast %27 : vector<2x8xf32> to vector<2x8x1xf32>
    %29 = tpu.reciprocal %28 {approx = true} : vector<2x8x1xf32> -> vector<2x8x1xf32>
    %30 = vector.broadcast %29 : vector<2x8x1xf32> to vector<2x8x8xf32>
    %31 = arith.mulf %26, %30 : vector<2x8x8xf32>
    %32 = arith.truncf %31 : vector<2x8x8xf32> to vector<2x8x8xbf16>
    %cst_14 = arith.constant dense<0.000000e+00> : vector<2x8x8xf32>
    %33 = tpu.matmul %32, %20, %cst_14 {dimension_numbers = #tpu.dot_dimension_numbers<[2], [1], [1], [2], [0, 0, 0, 1, 1, 2], [0], [0]>} : vector<2x8x8xbf16>, vector<2x8x8xbf16>, vector<2x8x8xf32> -> vector<2x8x8xf32>
    %34 = vector.extract_strided_slice %14 {offsets = [0, 0, 8], sizes = [2, 8, 8], strides = [1, 1, 1]} : vector<2x8x96xf32> to vector<2x8x8xf32>
    %35 = arith.truncf %34 : vector<2x8x8xf32> to vector<2x8x8xbf16>
    %36 = vector.extract_strided_slice %14 {offsets = [0, 0, 40], sizes = [2, 8, 8], strides = [1, 1, 1]} : vector<2x8x96xf32> to vector<2x8x8xf32>
    %37 = arith.truncf %36 : vector<2x8x8xf32> to vector<2x8x8xbf16>
    %38 = vector.extract_strided_slice %14 {offsets = [0, 0, 72], sizes = [2, 8, 8], strides = [1, 1, 1]} : vector<2x8x96xf32> to vector<2x8x8xf32>
    %39 = arith.truncf %38 : vector<2x8x8xf32> to vector<2x8x8xbf16>
    %cst_15 = arith.constant dense<0.000000e+00> : vector<2x8x8xf32>
    %40 = tpu.matmul %35, %37, %cst_15 {dimension_numbers = #tpu.dot_dimension_numbers<[2], [2], [1], [1], [0, 0, 0, 1, 1, 1], [0], [0]>} : vector<2x8x8xbf16>, vector<2x8x8xbf16>, vector<2x8x8xf32> -> vector<2x8x8xf32>
    %cst_16 = arith.constant dense<0xFF800000> : vector<2x8xf32>
    %41 = vector.multi_reduction <maximumf>, %40, %cst_16 [2] : vector<2x8x8xf32> to vector<2x8xf32>
    %42 = vector.shape_cast %41 : vector<2x8xf32> to vector<2x8x1xf32>
    %43 = vector.broadcast %42 : vector<2x8x1xf32> to vector<2x8x8xf32>
    %44 = arith.subf %40, %43 : vector<2x8x8xf32>
    %45 = math.exp %44 : vector<2x8x8xf32>
    %cst_17 = arith.constant dense<0.000000e+00> : vector<2x8xf32>
    %46 = vector.multi_reduction <add>, %45, %cst_17 [2] : vector<2x8x8xf32> to vector<2x8xf32>
    %47 = vector.shape_cast %46 : vector<2x8xf32> to vector<2x8x1xf32>
    %48 = tpu.reciprocal %47 {approx = true} : vector<2x8x1xf32> -> vector<2x8x1xf32>
    %49 = vector.broadcast %48 : vector<2x8x1xf32> to vector<2x8x8xf32>
    %50 = arith.mulf %45, %49 : vector<2x8x8xf32>
    %51 = arith.truncf %50 : vector<2x8x8xf32> to vector<2x8x8xbf16>
    %cst_18 = arith.constant dense<0.000000e+00> : vector<2x8x8xf32>
    %52 = tpu.matmul %51, %39, %cst_18 {dimension_numbers = #tpu.dot_dimension_numbers<[2], [1], [1], [2], [0, 0, 0, 1, 1, 2], [0], [0]>} : vector<2x8x8xbf16>, vector<2x8x8xbf16>, vector<2x8x8xf32> -> vector<2x8x8xf32>
    %53 = vector.extract_strided_slice %14 {offsets = [0, 0, 16], sizes = [2, 8, 8], strides = [1, 1, 1]} : vector<2x8x96xf32> to vector<2x8x8xf32>
    %54 = arith.truncf %53 : vector<2x8x8xf32> to vector<2x8x8xbf16>
    %55 = vector.extract_strided_slice %14 {offsets = [0, 0, 48], sizes = [2, 8, 8], strides = [1, 1, 1]} : vector<2x8x96xf32> to vector<2x8x8xf32>
    %56 = arith.truncf %55 : vector<2x8x8xf32> to vector<2x8x8xbf16>
    %57 = vector.extract_strided_slice %14 {offsets = [0, 0, 80], sizes = [2, 8, 8], strides = [1, 1, 1]} : vector<2x8x96xf32> to vector<2x8x8xf32>
    %58 = arith.truncf %57 : vector<2x8x8xf32> to vector<2x8x8xbf16>
    %cst_19 = arith.constant dense<0.000000e+00> : vector<2x8x8xf32>
    %59 = tpu.matmul %54, %56, %cst_19 {dimension_numbers = #tpu.dot_dimension_numbers<[2], [2], [1], [1], [0, 0, 0, 1, 1, 1], [0], [0]>} : vector<2x8x8xbf16>, vector<2x8x8xbf16>, vector<2x8x8xf32> -> vector<2x8x8xf32>
    %cst_20 = arith.constant dense<0xFF800000> : vector<2x8xf32>
    %60 = vector.multi_reduction <maximumf>, %59, %cst_20 [2] : vector<2x8x8xf32> to vector<2x8xf32>
    %61 = vector.shape_cast %60 : vector<2x8xf32> to vector<2x8x1xf32>
    %62 = vector.broadcast %61 : vector<2x8x1xf32> to vector<2x8x8xf32>
    %63 = arith.subf %59, %62 : vector<2x8x8xf32>
    %64 = math.exp %63 : vector<2x8x8xf32>
    %cst_21 = arith.constant dense<0.000000e+00> : vector<2x8xf32>
    %65 = vector.multi_reduction <add>, %64, %cst_21 [2] : vector<2x8x8xf32> to vector<2x8xf32>
    %66 = vector.shape_cast %65 : vector<2x8xf32> to vector<2x8x1xf32>
    %67 = tpu.reciprocal %66 {approx = true} : vector<2x8x1xf32> -> vector<2x8x1xf32>
    %68 = vector.broadcast %67 : vector<2x8x1xf32> to vector<2x8x8xf32>
    %69 = arith.mulf %64, %68 : vector<2x8x8xf32>
    %70 = arith.truncf %69 : vector<2x8x8xf32> to vector<2x8x8xbf16>
    %cst_22 = arith.constant dense<0.000000e+00> : vector<2x8x8xf32>
    %71 = tpu.matmul %70, %58, %cst_22 {dimension_numbers = #tpu.dot_dimension_numbers<[2], [1], [1], [2], [0, 0, 0, 1, 1, 2], [0], [0]>} : vector<2x8x8xbf16>, vector<2x8x8xbf16>, vector<2x8x8xf32> -> vector<2x8x8xf32>
    %72 = vector.extract_strided_slice %14 {offsets = [0, 0, 24], sizes = [2, 8, 8], strides = [1, 1, 1]} : vector<2x8x96xf32> to vector<2x8x8xf32>
    %73 = arith.truncf %72 : vector<2x8x8xf32> to vector<2x8x8xbf16>
    %74 = vector.extract_strided_slice %14 {offsets = [0, 0, 56], sizes = [2, 8, 8], strides = [1, 1, 1]} : vector<2x8x96xf32> to vector<2x8x8xf32>
    %75 = arith.truncf %74 : vector<2x8x8xf32> to vector<2x8x8xbf16>
    %76 = vector.extract_strided_slice %14 {offsets = [0, 0, 88], sizes = [2, 8, 8], strides = [1, 1, 1]} : vector<2x8x96xf32> to vector<2x8x8xf32>
    %77 = arith.truncf %76 : vector<2x8x8xf32> to vector<2x8x8xbf16>
    %cst_23 = arith.constant dense<0.000000e+00> : vector<2x8x8xf32>
    %78 = tpu.matmul %73, %75, %cst_23 {dimension_numbers = #tpu.dot_dimension_numbers<[2], [2], [1], [1], [0, 0, 0, 1, 1, 1], [0], [0]>} : vector<2x8x8xbf16>, vector<2x8x8xbf16>, vector<2x8x8xf32> -> vector<2x8x8xf32>
    %cst_24 = arith.constant dense<0xFF800000> : vector<2x8xf32>
    %79 = vector.multi_reduction <maximumf>, %78, %cst_24 [2] : vector<2x8x8xf32> to vector<2x8xf32>
    %80 = vector.shape_cast %79 : vector<2x8xf32> to vector<2x8x1xf32>
    %81 = vector.broadcast %80 : vector<2x8x1xf32> to vector<2x8x8xf32>
    %82 = arith.subf %78, %81 : vector<2x8x8xf32>
    %83 = math.exp %82 : vector<2x8x8xf32>
    %cst_25 = arith.constant dense<0.000000e+00> : vector<2x8xf32>
    %84 = vector.multi_reduction <add>, %83, %cst_25 [2] : vector<2x8x8xf32> to vector<2x8xf32>
    %85 = vector.shape_cast %84 : vector<2x8xf32> to vector<2x8x1xf32>
    %86 = tpu.reciprocal %85 {approx = true} : vector<2x8x1xf32> -> vector<2x8x1xf32>
    %87 = vector.broadcast %86 : vector<2x8x1xf32> to vector<2x8x8xf32>
    %88 = arith.mulf %83, %87 : vector<2x8x8xf32>
    %89 = arith.truncf %88 : vector<2x8x8xf32> to vector<2x8x8xbf16>
    %cst_26 = arith.constant dense<0.000000e+00> : vector<2x8x8xf32>
    %90 = tpu.matmul %89, %77, %cst_26 {dimension_numbers = #tpu.dot_dimension_numbers<[2], [1], [1], [2], [0, 0, 0, 1, 1, 2], [0], [0]>} : vector<2x8x8xbf16>, vector<2x8x8xbf16>, vector<2x8x8xf32> -> vector<2x8x8xf32>
    %91 = tpu.concatenate %33, %52, %71, %90 in 2 : vector<2x8x8xf32>, vector<2x8x8xf32>, vector<2x8x8xf32>, vector<2x8x8xf32> -> vector<2x8x32xf32>
    %92 = vector.shape_cast %91 : vector<2x8x32xf32> to vector<16x32xf32>
    %93 = arith.truncf %92 : vector<16x32xf32> to vector<16x32xbf16>
    %c0_27 = arith.constant 0 : index
    %c0_28 = arith.constant 0 : index
    %94 = vector.load %arg6[%c0_27, %c0_28] : memref<32x32xbf16, #tpu.memory_space<vmem>>, vector<32x32xbf16>
    %cst_29 = arith.constant dense<0.000000e+00> : vector<16x32xf32>
    %95 = tpu.matmul %93, %94, %cst_29 {dimension_numbers = #tpu.dot_dimension_numbers<[1], [0], [0], [1], [0, 0, 1, 1], [], []>} : vector<16x32xbf16>, vector<32x32xbf16>, vector<16x32xf32> -> vector<16x32xf32>
    %c0_30 = arith.constant 0 : index
    %c0_31 = arith.constant 0 : index
    %96 = vector.load %arg7[%c0_30, %c0_31] : memref<1x32xf32, #tpu.memory_space<vmem>>, vector<1x32xf32>
    %97 = vector.broadcast %96 : vector<1x32xf32> to vector<16x32xf32>
    %98 = arith.addf %95, %97 : vector<16x32xf32>
    %99 = arith.addf %7, %98 : vector<16x32xf32>
    %c0_32 = arith.constant 0 : index
    %c0_33 = arith.constant 0 : index
    %100 = vector.load %arg8[%c0_32, %c0_33] : memref<1x32xf32, #tpu.memory_space<vmem>>, vector<1x32xf32>
    %c0_34 = arith.constant 0 : index
    %c0_35 = arith.constant 0 : index
    %101 = vector.load %arg9[%c0_34, %c0_35] : memref<1x32xf32, #tpu.memory_space<vmem>>, vector<1x32xf32>
    %cst_36 = arith.constant dense<0.000000e+00> : vector<16xf32>
    %102 = vector.multi_reduction <add>, %99, %cst_36 [1] : vector<16x32xf32> to vector<16xf32>
    %103 = vector.shape_cast %102 : vector<16xf32> to vector<16x1xf32>
    %cst_37 = arith.constant 3.200000e+01 : f32
    %104 = vector.broadcast %cst_37 : f32 to vector<16x1xf32>
    %105 = arith.divf %103, %104 : vector<16x1xf32>
    %106 = vector.broadcast %105 : vector<16x1xf32> to vector<16x32xf32>
    %107 = arith.subf %99, %106 : vector<16x32xf32>
    %108 = arith.mulf %107, %107 : vector<16x32xf32>
    %cst_38 = arith.constant dense<0.000000e+00> : vector<16xf32>
    %109 = vector.multi_reduction <add>, %108, %cst_38 [1] : vector<16x32xf32> to vector<16xf32>
    %110 = vector.shape_cast %109 : vector<16xf32> to vector<16x1xf32>
    %cst_39 = arith.constant 3.200000e+01 : f32
    %111 = vector.broadcast %cst_39 : f32 to vector<16x1xf32>
    %112 = arith.divf %110, %111 : vector<16x1xf32>
    %cst_40 = arith.constant 9.99999974E-6 : f32
    %113 = vector.broadcast %cst_40 : f32 to vector<16x1xf32>
    %114 = arith.addf %112, %113 : vector<16x1xf32>
    %115 = math.rsqrt %114 : vector<16x1xf32>
    %116 = vector.broadcast %115 : vector<16x1xf32> to vector<16x32xf32>
    %117 = arith.mulf %107, %116 : vector<16x32xf32>
    %118 = vector.broadcast %100 : vector<1x32xf32> to vector<16x32xf32>
    %119 = arith.mulf %117, %118 : vector<16x32xf32>
    %120 = vector.broadcast %101 : vector<1x32xf32> to vector<16x32xf32>
    %121 = arith.addf %119, %120 : vector<16x32xf32>
    %122 = arith.truncf %121 : vector<16x32xf32> to vector<16x32xbf16>
    %c0_41 = arith.constant 0 : index
    %c0_42 = arith.constant 0 : index
    %123 = vector.load %arg10[%c0_41, %c0_42] : memref<32x64xbf16, #tpu.memory_space<vmem>>, vector<32x64xbf16>
    %cst_43 = arith.constant dense<0.000000e+00> : vector<16x64xf32>
    %124 = tpu.matmul %122, %123, %cst_43 {dimension_numbers = #tpu.dot_dimension_numbers<[1], [0], [0], [1], [0, 0, 1, 1], [], []>} : vector<16x32xbf16>, vector<32x64xbf16>, vector<16x64xf32> -> vector<16x64xf32>
    %c0_44 = arith.constant 0 : index
    %c0_45 = arith.constant 0 : index
    %125 = vector.load %arg11[%c0_44, %c0_45] : memref<1x64xf32, #tpu.memory_space<vmem>>, vector<1x64xf32>
    %126 = vector.broadcast %125 : vector<1x64xf32> to vector<16x64xf32>
    %127 = arith.addf %124, %126 : vector<16x64xf32>
    %cst_46 = arith.constant 0.000000e+00 : f32
    %128 = vector.broadcast %cst_46 : f32 to vector<16x64xf32>
    %129 = arith.maximumf %127, %128 : vector<16x64xf32>
    %130 = arith.truncf %129 : vector<16x64xf32> to vector<16x64xbf16>
    %c0_47 = arith.constant 0 : index
    %c0_48 = arith.constant 0 : index
    %131 = vector.load %arg12[%c0_47, %c0_48] : memref<64x32xbf16, #tpu.memory_space<vmem>>, vector<64x32xbf16>
    %cst_49 = arith.constant dense<0.000000e+00> : vector<16x32xf32>
    %132 = tpu.matmul %130, %131, %cst_49 {dimension_numbers = #tpu.dot_dimension_numbers<[1], [0], [0], [1], [0, 0, 1, 1], [], []>} : vector<16x64xbf16>, vector<64x32xbf16>, vector<16x32xf32> -> vector<16x32xf32>
    %c0_50 = arith.constant 0 : index
    %c0_51 = arith.constant 0 : index
    %133 = vector.load %arg13[%c0_50, %c0_51] : memref<1x32xf32, #tpu.memory_space<vmem>>, vector<1x32xf32>
    %134 = vector.broadcast %133 : vector<1x32xf32> to vector<16x32xf32>
    %135 = arith.addf %132, %134 : vector<16x32xf32>
    %136 = arith.addf %121, %135 : vector<16x32xf32>
    %c0_52 = arith.constant 0 : index
    %c0_53 = arith.constant 0 : index
    %137 = vector.load %arg14[%c0_52, %c0_53] : memref<1x32xf32, #tpu.memory_space<vmem>>, vector<1x32xf32>
    %c0_54 = arith.constant 0 : index
    %c0_55 = arith.constant 0 : index
    %138 = vector.load %arg15[%c0_54, %c0_55] : memref<1x32xf32, #tpu.memory_space<vmem>>, vector<1x32xf32>
    %cst_56 = arith.constant dense<0.000000e+00> : vector<16xf32>
    %139 = vector.multi_reduction <add>, %136, %cst_56 [1] : vector<16x32xf32> to vector<16xf32>
    %140 = vector.shape_cast %139 : vector<16xf32> to vector<16x1xf32>
    %cst_57 = arith.constant 3.200000e+01 : f32
    %141 = vector.broadcast %cst_57 : f32 to vector<16x1xf32>
    %142 = arith.divf %140, %141 : vector<16x1xf32>
    %143 = vector.broadcast %142 : vector<16x1xf32> to vector<16x32xf32>
    %144 = arith.subf %136, %143 : vector<16x32xf32>
    %145 = arith.mulf %144, %144 : vector<16x32xf32>
    %cst_58 = arith.constant dense<0.000000e+00> : vector<16xf32>
    %146 = vector.multi_reduction <add>, %145, %cst_58 [1] : vector<16x32xf32> to vector<16xf32>
    %147 = vector.shape_cast %146 : vector<16xf32> to vector<16x1xf32>
    %cst_59 = arith.constant 3.200000e+01 : f32
    %148 = vector.broadcast %cst_59 : f32 to vector<16x1xf32>
    %149 = arith.divf %147, %148 : vector<16x1xf32>
    %cst_60 = arith.constant 9.99999974E-6 : f32
    %150 = vector.broadcast %cst_60 : f32 to vector<16x1xf32>
    %151 = arith.addf %149, %150 : vector<16x1xf32>
    %152 = math.rsqrt %151 : vector<16x1xf32>
    %153 = vector.broadcast %152 : vector<16x1xf32> to vector<16x32xf32>
    %154 = arith.mulf %144, %153 : vector<16x32xf32>
    %155 = vector.broadcast %137 : vector<1x32xf32> to vector<16x32xf32>
    %156 = arith.mulf %154, %155 : vector<16x32xf32>
    %157 = vector.broadcast %138 : vector<1x32xf32> to vector<16x32xf32>
    %158 = arith.addf %156, %157 : vector<16x32xf32>
    %159 = arith.truncf %158 : vector<16x32xf32> to vector<16x32xbf16>
    %c0_61 = arith.constant 0 : index
    %c0_62 = arith.constant 0 : index
    %160 = vector.load %arg16[%c0_61, %c0_62] : memref<32x128xbf16, #tpu.memory_space<vmem>>, vector<32x128xbf16>
    %cst_63 = arith.constant dense<0.000000e+00> : vector<16x128xf32>
    %161 = tpu.matmul %159, %160, %cst_63 {dimension_numbers = #tpu.dot_dimension_numbers<[1], [0], [0], [1], [0, 0, 1, 1], [], []>} : vector<16x32xbf16>, vector<32x128xbf16>, vector<16x128xf32> -> vector<16x128xf32>
    %c0_64 = arith.constant 0 : index
    %c0_65 = arith.constant 0 : index
    %162 = vector.load %arg17[%c0_64, %c0_65] : memref<1x128xf32, #tpu.memory_space<vmem>>, vector<1x128xf32>
    %163 = vector.broadcast %162 : vector<1x128xf32> to vector<16x128xf32>
    %164 = arith.addf %161, %163 : vector<16x128xf32>
    %165 = arith.truncf %164 : vector<16x128xf32> to vector<16x128xbf16>
    %c0_66 = arith.constant 0 : index
    %c0_67 = arith.constant 0 : index
    %166 = vector.load %arg18[%c0_66, %c0_67] : memref<128x128xbf16, #tpu.memory_space<vmem>>, vector<128x128xbf16>
    %cst_68 = arith.constant dense<0.000000e+00> : vector<16x128xf32>
    %167 = tpu.matmul %165, %166, %cst_68 {dimension_numbers = #tpu.dot_dimension_numbers<[1], [0], [0], [1], [0, 0, 1, 1], [], []>} : vector<16x128xbf16>, vector<128x128xbf16>, vector<16x128xf32> -> vector<16x128xf32>
    %c0_69 = arith.constant 0 : index
    %c0_70 = arith.constant 0 : index
    %168 = vector.load %arg19[%c0_69, %c0_70] : memref<1x128xf32, #tpu.memory_space<vmem>>, vector<1x128xf32>
    %169 = vector.broadcast %168 : vector<1x128xf32> to vector<16x128xf32>
    %170 = arith.addf %167, %169 : vector<16x128xf32>
    %171 = vector.shape_cast %164 : vector<16x128xf32> to vector<2x8x128xf32>
    %172 = vector.shape_cast %170 : vector<16x128xf32> to vector<2x8x128xf32>
    %173 = vector.extract_strided_slice %171 {offsets = [0, 0, 0], sizes = [1, 8, 2], strides = [1, 1, 1]} : vector<2x8x128xf32> to vector<1x8x2xf32>
    %174 = vector.shape_cast %173 : vector<1x8x2xf32> to vector<8x2xf32>
    %175 = vector.shape_cast %174 : vector<8x2xf32> to vector<8x1x2xf32>
    %c0_71 = arith.constant 0 : index
    %c0_72 = arith.constant 0 : index
    %c0_73 = arith.constant 0 : index
    %176 = vector.load %arg20[%c0_71, %c0_72, %c0_73] : memref<8x2x2xf32, #tpu.memory_space<vmem>>, vector<8x1x2xf32>
    tpu.vector_store %arg20[%c0_71, %c0_72, %c0_73], %175 {strides = array<i32>} : memref<8x2x2xf32, #tpu.memory_space<vmem>>, vector<8x1x2xf32>,
    %177 = vector.extract_strided_slice %172 {offsets = [0, 0, 0], sizes = [1, 8, 128], strides = [1, 1, 1]} : vector<2x8x128xf32> to vector<1x8x128xf32>
    %178 = vector.shape_cast %177 : vector<1x8x128xf32> to vector<8x128xf32>
    %179 = vector.shape_cast %178 : vector<8x128xf32> to vector<8x1x128xf32>
    %c0_74 = arith.constant 0 : index
    %c0_75 = arith.constant 0 : index
    %c0_76 = arith.constant 0 : index
    %180 = vector.load %arg21[%c0_74, %c0_75, %c0_76] : memref<8x2x128xf32, #tpu.memory_space<vmem>>, vector<8x1x128xf32>
    tpu.vector_store %arg21[%c0_74, %c0_75, %c0_76], %179 {strides = array<i32>} : memref<8x2x128xf32, #tpu.memory_space<vmem>>, vector<8x1x128xf32>,
    %181 = vector.extract_strided_slice %171 {offsets = [1, 0, 0], sizes = [1, 8, 2], strides = [1, 1, 1]} : vector<2x8x128xf32> to vector<1x8x2xf32>
    %182 = vector.shape_cast %181 : vector<1x8x2xf32> to vector<8x2xf32>
    %183 = vector.shape_cast %182 : vector<8x2xf32> to vector<8x1x2xf32>
    %c0_77 = arith.constant 0 : index
    %c1 = arith.constant 1 : index
    %c0_78 = arith.constant 0 : index
    %184 = vector.load %arg20[%c0_77, %c1, %c0_78] : memref<8x2x2xf32, #tpu.memory_space<vmem>>, vector<8x1x2xf32>
    tpu.vector_store %arg20[%c0_77, %c1, %c0_78], %183 {strides = array<i32>} : memref<8x2x2xf32, #tpu.memory_space<vmem>>, vector<8x1x2xf32>,
    %185 = vector.extract_strided_slice %172 {offsets = [1, 0, 0], sizes = [1, 8, 128], strides = [1, 1, 1]} : vector<2x8x128xf32> to vector<1x8x128xf32>
    %186 = vector.shape_cast %185 : vector<1x8x128xf32> to vector<8x128xf32>
    %187 = vector.shape_cast %186 : vector<8x128xf32> to vector<8x1x128xf32>
    %c0_79 = arith.constant 0 : index
    %c1_80 = arith.constant 1 : index
    %c0_81 = arith.constant 0 : index
    %188 = vector.load %arg21[%c0_79, %c1_80, %c0_81] : memref<8x2x128xf32, #tpu.memory_space<vmem>>, vector<8x1x128xf32>
    tpu.vector_store %arg21[%c0_79, %c1_80, %c0_81], %187 {strides = array<i32>} : memref<8x2x128xf32, #tpu.memory_space<vmem>>, vector<8x1x128xf32>,
    return
  }
  func.func @transform_0(%arg0: i32) -> (i32, i32, i32) {
    %c0_i32 = arith.constant 0 : i32
    %c0_i32_0 = arith.constant 0 : i32
    %c0_i32_1 = arith.constant 0 : i32
    return %arg0, %c0_i32, %c0_i32_0 : i32, i32, i32
  }
  func.func @transform_1(%arg0: i32) -> (i32, i32) {
    %c0_i32 = arith.constant 0 : i32
    %c0_i32_0 = arith.constant 0 : i32
    %c0_i32_1 = arith.constant 0 : i32
    return %c0_i32, %c0_i32_0 : i32, i32
  }
  func.func @transform_2(%arg0: i32) -> (i32, i32) {
    %c0_i32 = arith.constant 0 : i32
    %c0_i32_0 = arith.constant 0 : i32
    %c0_i32_1 = arith.constant 0 : i32
    return %c0_i32, %c0_i32_0 : i32, i32
  }
  func.func @transform_3(%arg0: i32) -> (i32, i32) {
    %c0_i32 = arith.constant 0 : i32
    %c0_i32_0 = arith.constant 0 : i32
    %c0_i32_1 = arith.constant 0 : i32
    return %c0_i32, %c0_i32_0 : i32, i32
  }
  func.func @transform_4(%arg0: i32) -> (i32, i32) {
    %c0_i32 = arith.constant 0 : i32
    %c0_i32_0 = arith.constant 0 : i32
    %c0_i32_1 = arith.constant 0 : i32
    return %c0_i32, %c0_i32_0 : i32, i32
  }
  func.func @transform_5(%arg0: i32) -> (i32, i32) {
    %c0_i32 = arith.constant 0 : i32
    %c0_i32_0 = arith.constant 0 : i32
    %c0_i32_1 = arith.constant 0 : i32
    return %c0_i32, %c0_i32_0 : i32, i32
  }
  func.func @transform_6(%arg0: i32) -> (i32, i32) {
    %c0_i32 = arith.constant 0 : i32
    %c0_i32_0 = arith.constant 0 : i32
    %c0_i32_1 = arith.constant 0 : i32
    return %c0_i32, %c0_i32_0 : i32, i32
  }
  func.func @transform_7(%arg0: i32) -> (i32, i32) {
    %c0_i32 = arith.constant 0 : i32
    %c0_i32_0 = arith.constant 0 : i32
    %c0_i32_1 = arith.constant 0 : i32
    return %c0_i32, %c0_i32_0 : i32, i32
  }
  func.func @transform_8(%arg0: i32) -> (i32, i32) {
    %c0_i32 = arith.constant 0 : i32
    %c0_i32_0 = arith.constant 0 : i32
    %c0_i32_1 = arith.constant 0 : i32
    return %c0_i32, %c0_i32_0 : i32, i32
  }
  func.func @transform_9(%arg0: i32) -> (i32, i32) {
    %c0_i32 = arith.constant 0 : i32
    %c0_i32_0 = arith.constant 0 : i32
    %c0_i32_1 = arith.constant 0 : i32
    return %c0_i32, %c0_i32_0 : i32, i32
  }
  func.func @transform_10(%arg0: i32) -> (i32, i32) {
    %c0_i32 = arith.constant 0 : i32
    %c0_i32_0 = arith.constant 0 : i32
    %c0_i32_1 = arith.constant 0 : i32
    return %c0_i32, %c0_i32_0 : i32, i32
  }
  func.func @transform_11(%arg0: i32) -> (i32, i32) {
    %c0_i32 = arith.constant 0 : i32
    %c0_i32_0 = arith.constant 0 : i32
    %c0_i32_1 = arith.constant 0 : i32
    return %c0_i32, %c0_i32_0 : i32, i32
  }
  func.func @transform_12(%arg0: i32) -> (i32, i32) {
    %c0_i32 = arith.constant 0 : i32
    %c0_i32_0 = arith.constant 0 : i32
    %c0_i32_1 = arith.constant 0 : i32
    return %c0_i32, %c0_i32_0 : i32, i32
  }
  func.func @transform_13(%arg0: i32) -> (i32, i32) {
    %c0_i32 = arith.constant 0 : i32
    %c0_i32_0 = arith.constant 0 : i32
    %c0_i32_1 = arith.constant 0 : i32
    return %c0_i32, %c0_i32_0 : i32, i32
  }
  func.func @transform_14(%arg0: i32) -> (i32, i32) {
    %c0_i32 = arith.constant 0 : i32
    %c0_i32_0 = arith.constant 0 : i32
    %c0_i32_1 = arith.constant 0 : i32
    return %c0_i32, %c0_i32_0 : i32, i32
  }
  func.func @transform_15(%arg0: i32) -> (i32, i32) {
    %c0_i32 = arith.constant 0 : i32
    %c0_i32_0 = arith.constant 0 : i32
    %c0_i32_1 = arith.constant 0 : i32
    return %c0_i32, %c0_i32_0 : i32, i32
  }
  func.func @transform_16(%arg0: i32) -> (i32, i32) {
    %c0_i32 = arith.constant 0 : i32
    %c0_i32_0 = arith.constant 0 : i32
    %c0_i32_1 = arith.constant 0 : i32
    return %c0_i32, %c0_i32_0 : i32, i32
  }
  func.func @transform_17(%arg0: i32) -> (i32, i32) {
    %c0_i32 = arith.constant 0 : i32
    %c0_i32_0 = arith.constant 0 : i32
    %c0_i32_1 = arith.constant 0 : i32
    return %c0_i32, %c0_i32_0 : i32, i32
  }
  func.func @transform_18(%arg0: i32) -> (i32, i32) {
    %c0_i32 = arith.constant 0 : i32
    %c0_i32_0 = arith.constant 0 : i32
    %c0_i32_1 = arith.constant 0 : i32
    return %c0_i32, %c0_i32_0 : i32, i32
  }
  func.func @transform_19(%arg0: i32) -> (i32, i32, i32) {
    %c0_i32 = arith.constant 0 : i32
    %c0_i32_0 = arith.constant 0 : i32
    %c0_i32_1 = arith.constant 0 : i32
    return %c0_i32, %arg0, %c0_i32_0 : i32, i32, i32
  }
  func.func @transform_20(%arg0: i32) -> (i32, i32, i32) {
    %c0_i32 = arith.constant 0 : i32
    %c0_i32_0 = arith.constant 0 : i32
    %c0_i32_1 = arith.constant 0 : i32
    return %c0_i32, %arg0, %c0_i32_0 : i32, i32, i32
  }
}

</mosaic_0001>

<llo_original>
// kernel: _fwd.1
$region0: #{_fwd.1}
  #allocation0 [shape = 'u32[]', space=smem, size = 0x4, offset = 0x4, fixed_abs, tag = 'smem constant byte address 0x4 - core index']
  #allocation1 [shape = 'u32[72,128]{1,0:T(1,128)}', space=vmem, size = 0x9000, scoped, tag = 'internal scratch']
  %s0 = inlined_call_operand.hbm [shape: f32[2,8,32], index: 0, kind: input, shape index: {}]
  %s1 = inlined_call_operand.hbm [shape: bf16[32,32], index: 1, kind: input, shape index: {}]
  %s2 = inlined_call_operand.hbm [shape: f32[1,32], index: 2, kind: input, shape index: {}]
  %s3 = inlined_call_operand.hbm [shape: bf16[32,96], index: 3, kind: input, shape index: {}]
  %s4 = inlined_call_operand.hbm [shape: f32[1,96], index: 4, kind: input, shape index: {}]
  %s5 = inlined_call_operand.hbm [shape: bf16[32,32], index: 5, kind: input, shape index: {}]
  %s6 = inlined_call_operand.hbm [shape: f32[1,32], index: 6, kind: input, shape index: {}]
  %s7 = inlined_call_operand.hbm [shape: f32[1,32], index: 7, kind: input, shape index: {}]
  %s8 = inlined_call_operand.hbm [shape: f32[1,32], index: 8, kind: input, shape index: {}]
  %s9 = inlined_call_operand.hbm [shape: bf16[32,64], index: 9, kind: input, shape index: {}]
  %s10 = inlined_call_operand.hbm [shape: f32[1,64], index: 10, kind: input, shape index: {}]
  %s11 = inlined_call_operand.vmem [shape: bf16[64,32], index: 11, kind: input, shape index: {}]
  %s12 = inlined_call_operand.hbm [shape: f32[1,32], index: 12, kind: input, shape index: {}]
  %s13 = inlined_call_operand.hbm [shape: f32[1,32], index: 13, kind: input, shape index: {}]
  %s14 = inlined_call_operand.hbm [shape: f32[1,32], index: 14, kind: input, shape index: {}]
  %s15 = inlined_call_operand.hbm [shape: bf16[32,128], index: 15, kind: input, shape index: {}]
  %s16 = inlined_call_operand.hbm [shape: f32[1,128], index: 16, kind: input, shape index: {}]
  %s17 = inlined_call_operand.vmem [shape: bf16[128,128], index: 17, kind: input, shape index: {}]
  %s18 = inlined_call_operand.vmem [shape: f32[1,128], index: 18, kind: input, shape index: {}]
  %s19 = inlined_call_operand.vmem [shape: f32[8,2,2], index: 19, kind: output, shape index: {0}]
  %s20 = inlined_call_operand.hbm [shape: f32[8,2,128], index: 20, kind: output, shape index: {1}]
  %21 = xla_tuple %s19, %s20
  %s22 = sld [smem:[#allocation0]]
  $region158: #{_fwd.1} parent=0
    _
  %s24 = ssub.s32 1, %s22
  %s25 = scalar_select 0, %s24, %s22
  $region1: #{_fwd.1} parent=0
    #allocation2 [shape = 'u8[8192]{0}', space=vmem, size = 0x2000, scoped, tag = 'input window, operand 0, single buffered']
    #allocation3 [shape = 's32[1]{0}', space=sflag, size = 0x4, scoped, tag = 'scoped memory for _fwd.1']
    #allocation4 [shape = 's32[1]{0}', space=sflag, size = 0x4, scoped, tag = 'scoped memory for _fwd.1']
    #allocation5 [shape = 'u8[8192]{0}', space=vmem, size = 0x2000, scoped, tag = 'input window, operand 1, single buffered']
    #allocation6 [shape = 's32[1]{0}', space=sflag, size = 0x4, scoped, tag = 'scoped memory for _fwd.1']
    #allocation7 [shape = 'u8[512]{0}', space=vmem, size = 0x400, scoped, tag = 'input window, operand 2, single buffered']
    #allocation8 [shape = 'u8[8192]{0}', space=vmem, size = 0x2000, scoped, tag = 'input window, operand 3, single buffered']
    #allocation9 [shape = 's32[1]{0}', space=sflag, size = 0x4, scoped, tag = 'scoped memory for _fwd.1']
    #allocation10 [shape = 'u8[512]{0}', space=vmem, size = 0x400, scoped, tag = 'input window, operand 4, single buffered']
    #allocation11 [shape = 'u8[8192]{0}', space=vmem, size = 0x2000, scoped, tag = 'input window, operand 5, single buffered']
    #allocation12 [shape = 's32[1]{0}', space=sflag, size = 0x4, scoped, tag = 'scoped memory for _fwd.1']
    #allocation13 [shape = 'u8[512]{0}', space=vmem, size = 0x400, scoped, tag = 'input window, operand 6, single buffered']
    #allocation14 [shape = 'u8[512]{0}', space=vmem, size = 0x400, scoped, tag = 'input window, operand 7, single buffered']
    #allocation15 [shape = 's32[1]{0}', space=sflag, size = 0x4, scoped, tag = 'scoped memory for _fwd.1']
    #allocation16 [shape = 'u8[512]{0}', space=vmem, size = 0x400, scoped, tag = 'input window, operand 8, single buffered']
    #allocation17 [shape = 'u8[8192]{0}', space=vmem, size = 0x2000, scoped, tag = 'input window, operand 9, single buffered']
    #allocation18 [shape = 's32[1]{0}', space=sflag, size = 0x4, scoped, tag = 'scoped memory for _fwd.1']
    #allocation19 [shape = 'u8[512]{0}', space=vmem, size = 0x400, scoped, tag = 'input window, operand 10, single buffered']
    #allocation20 [shape = 'u8[512]{0}', space=vmem, size = 0x400, scoped, tag = 'input window, operand 12, single buffered']
    #allocation21 [shape = 's32[1]{0}', space=sflag, size = 0x4, scoped, tag = 'scoped memory for _fwd.1']
    #allocation22 [shape = 'u8[512]{0}', space=vmem, size = 0x400, scoped, tag = 'input window, operand 13, single buffered']
    #allocation23 [shape = 'u8[512]{0}', space=vmem, size = 0x400, scoped, tag = 'input window, operand 14, single buffered']
    #allocation24 [shape = 's32[1]{0}', space=sflag, size = 0x4, scoped, tag = 'scoped memory for _fwd.1']
    #allocation25 [shape = 'u8[8192]{0}', space=vmem, size = 0x2000, scoped, tag = 'input window, operand 15, single buffered']
    #allocation26 [shape = 'u8[512]{0}', space=vmem, size = 0x400, scoped, tag = 'input window, operand 16, single buffered']
    #allocation27 [shape = 's32[1]{0}', space=sflag, size = 0x4, scoped, tag = 'scoped memory for _fwd.1']
    #allocation28 [shape = 'u8[8192]{0}', space=vmem, size = 0x2000, scoped, tag = 'output window, operand 1, single buffered']
    %26 = vsyncpa [#allocation3], 0
    %27 = vsyncpa [#allocation6], 0
    %28 = vsyncpa [#allocation9], 0
    %29 = vsyncpa [#allocation12], 0
    %30 = vsyncpa [#allocation15], 0
    %31 = vsyncpa [#allocation18], 0
    %32 = vsyncpa [#allocation21], 0
    %33 = vsyncpa [#allocation24], 0
    %34 = vsyncpa [#allocation27], 0
    %35 = vsyncpa [#allocation4], 0
    // Predicated region
    $region2: #{_fwd.1} parent=1 // pred_check
      _
    $region3: #{_fwd.1} parent=1 // pred_check_branch
      %37 = sbr.rel (0) target = $region5
    $region4: #{_fwd.1} parent=1 // pred_region
      %39 = vsyncadd [#allocation3], 0
      %s40 = sshll.u32 %s0, 4
      %s41 = int_to_ptr.hbm [resolvable:$true] %s40
      %s42 = sshll.u32 [#allocation2], 4
      %s43 = int_to_ptr.vmem [resolvable:$true] %s42
      %48 = dma.hbm_to_vmem [thread:$0]  %s41, 256, %s43, [#allocation3], 128, 128, 8
    $region5: #{_fwd.1} parent=1 // pred_fallthru
      _
    // Predicated region
    $region6: #{_fwd.1} parent=1 // pred_check
      _
    $region7: #{_fwd.1} parent=1 // pred_check_branch
      %50 = sbr.rel (0) target = $region9
    $region8: #{_fwd.1} parent=1 // pred_region
      %52 = vsyncadd [#allocation6], 0
      %s53 = sshll.u32 %s1, 4
      %s54 = int_to_ptr.hbm [resolvable:$true] %s53
      %s55 = sshll.u32 [#allocation5], 4
      %s56 = int_to_ptr.vmem [resolvable:$true] %s55
      %61 = dma.hbm_to_vmem [thread:$0]  %s54, 256, %s56, [#allocation6], 64, 64, 4
    $region9: #{_fwd.1} parent=1 // pred_fallthru
      _
    // Predicated region
    $region10: #{_fwd.1} parent=1 // pred_check
      _
    $region11: #{_fwd.1} parent=1 // pred_check_branch
      %63 = sbr.rel (0) target = $region13
    $region12: #{_fwd.1} parent=1 // pred_region
      %65 = vsyncadd [#allocation6], 0
      %s67 = sshll.u32 %s2, 4
      %s68 = int_to_ptr.hbm [resolvable:$true] %s67
      %s69 = sshll.u32 [#allocation7], 4
      %s70 = int_to_ptr.vmem [resolvable:$true] %s69
      %72 = dma.hbm_to_vmem [thread:$0]  %s68, 16, %s70, [#allocation6]
    $region13: #{_fwd.1} parent=1 // pred_fallthru
      _
    // Predicated region
    $region14: #{_fwd.1} parent=1 // pred_check
      _
    $region15: #{_fwd.1} parent=1 // pred_check_branch
      %74 = sbr.rel (0) target = $region17
    $region16: #{_fwd.1} parent=1 // pred_region
      %76 = vsyncadd [#allocation9], 0
      %s77 = sshll.u32 %s3, 4
      %s78 = int_to_ptr.hbm [resolvable:$true] %s77
      %s79 = sshll.u32 [#allocation8], 4
      %s80 = int_to_ptr.vmem [resolvable:$true] %s79
      %85 = dma.hbm_to_vmem [thread:$0]  %s78, 256, %s80, [#allocation9], 64, 64, 4
    $region17: #{_fwd.1} parent=1 // pred_fallthru
      _
    // Predicated region
    $region18: #{_fwd.1} parent=1 // pred_check
      _
    $region19: #{_fwd.1} parent=1 // pred_check_branch
      %87 = sbr.rel (0) target = $region21
    $region20: #{_fwd.1} parent=1 // pred_region
      %89 = vsyncadd [#allocation9], 0
      %s91 = sshll.u32 %s4, 4
      %s92 = int_to_ptr.hbm [resolvable:$true] %s91
      %s93 = sshll.u32 [#allocation10], 4
      %s94 = int_to_ptr.vmem [resolvable:$true] %s93
      %96 = dma.hbm_to_vmem [thread:$0]  %s92, 16, %s94, [#allocation9]
    $region21: #{_fwd.1} parent=1 // pred_fallthru
      _
    // Predicated region
    $region22: #{_fwd.1} parent=1 // pred_check
      _
    $region23: #{_fwd.1} parent=1 // pred_check_branch
      %98 = sbr.rel (0) target = $region25
    $region24: #{_fwd.1} parent=1 // pred_region
      %100 = vsyncadd [#allocation12], 0
      %s101 = sshll.u32 %s5, 4
      %s102 = int_to_ptr.hbm [resolvable:$true] %s101
      %s103 = sshll.u32 [#allocation11], 4
      %s104 = int_to_ptr.vmem [resolvable:$true] %s103
      %109 = dma.hbm_to_vmem [thread:$0]  %s102, 256, %s104, [#allocation12], 64, 64, 4
    $region25: #{_fwd.1} parent=1 // pred_fallthru
      _
    // Predicated region
    $region26: #{_fwd.1} parent=1 // pred_check
      _
    $region27: #{_fwd.1} parent=1 // pred_check_branch
      %111 = sbr.rel (0) target = $region29
    $region28: #{_fwd.1} parent=1 // pred_region
      %113 = vsyncadd [#allocation12], 0
      %s115 = sshll.u32 %s6, 4
      %s116 = int_to_ptr.hbm [resolvable:$true] %s115
      %s117 = sshll.u32 [#allocation13], 4
      %s118 = int_to_ptr.vmem [resolvable:$true] %s117
      %120 = dma.hbm_to_vmem [thread:$0]  %s116, 16, %s118, [#allocation12]
    $region29: #{_fwd.1} parent=1 // pred_fallthru
      _
    // Predicated region
    $region30: #{_fwd.1} parent=1 // pred_check
      _
    $region31: #{_fwd.1} parent=1 // pred_check_branch
      %122 = sbr.rel (0) target = $region33
    $region32: #{_fwd.1} parent=1 // pred_region
      %124 = vsyncadd [#allocation15], 0
      %s126 = sshll.u32 %s7, 4
      %s127 = int_to_ptr.hbm [resolvable:$true] %s126
      %s128 = sshll.u32 [#allocation14], 4
      %s129 = int_to_ptr.vmem [resolvable:$true] %s128
      %131 = dma.hbm_to_vmem [thread:$0]  %s127, 16, %s129, [#allocation15]
    $region33: #{_fwd.1} parent=1 // pred_fallthru
      _
    // Predicated region
    $region34: #{_fwd.1} parent=1 // pred_check
      _
    $region35: #{_fwd.1} parent=1 // pred_check_branch
      %133 = sbr.rel (0) target = $region37
    $region36: #{_fwd.1} parent=1 // pred_region
      %135 = vsyncadd [#allocation15], 0
      %s137 = sshll.u32 %s8, 4
      %s138 = int_to_ptr.hbm [resolvable:$true] %s137
      %s139 = sshll.u32 [#allocation16], 4
      %s140 = int_to_ptr.vmem [resolvable:$true] %s139
      %142 = dma.hbm_to_vmem [thread:$0]  %s138, 16, %s140, [#allocation15]
    $region37: #{_fwd.1} parent=1 // pred_fallthru
      _
    // Predicated region
    $region38: #{_fwd.1} parent=1 // pred_check
      _
    $region39: #{_fwd.1} parent=1 // pred_check_branch
      %144 = sbr.rel (0) target = $region41
    $region40: #{_fwd.1} parent=1 // pred_region
      %146 = vsyncadd [#allocation18], 0
      %s147 = sshll.u32 %s9, 4
      %s148 = int_to_ptr.hbm [resolvable:$true] %s147
      %s149 = sshll.u32 [#allocation17], 4
      %s150 = int_to_ptr.vmem [resolvable:$true] %s149
      %155 = dma.hbm_to_vmem [thread:$0]  %s148, 256, %s150, [#allocation18], 64, 64, 4
    $region41: #{_fwd.1} parent=1 // pred_fallthru
      _
    // Predicated region
    $region42: #{_fwd.1} parent=1 // pred_check
      _
    $region43: #{_fwd.1} parent=1 // pred_check_branch
      %157 = sbr.rel (0) target = $region45
    $region44: #{_fwd.1} parent=1 // pred_region
      %159 = vsyncadd [#allocation18], 0
      %s161 = sshll.u32 %s10, 4
      %s162 = int_to_ptr.hbm [resolvable:$true] %s161
      %s163 = sshll.u32 [#allocation19], 4
      %s164 = int_to_ptr.vmem [resolvable:$true] %s163
      %166 = dma.hbm_to_vmem [thread:$0]  %s162, 16, %s164, [#allocation18]
    $region45: #{_fwd.1} parent=1 // pred_fallthru
      _
    // Predicated region
    $region46: #{_fwd.1} parent=1 // pred_check
      _
    $region47: #{_fwd.1} parent=1 // pred_check_branch
      %168 = sbr.rel (0) target = $region49
    $region48: #{_fwd.1} parent=1 // pred_region
      _
    $region49: #{_fwd.1} parent=1 // pred_fallthru
      _
    // Predicated region
    $region50: #{_fwd.1} parent=1 // pred_check
      _
    $region51: #{_fwd.1} parent=1 // pred_check_branch
      %170 = sbr.rel (0) target = $region53
    $region52: #{_fwd.1} parent=1 // pred_region
      %172 = vsyncadd [#allocation21], 0
      %s174 = sshll.u32 %s12, 4
      %s175 = int_to_ptr.hbm [resolvable:$true] %s174
      %s176 = sshll.u32 [#allocation20], 4
      %s177 = int_to_ptr.vmem [resolvable:$true] %s176
      %179 = dma.hbm_to_vmem [thread:$0]  %s175, 16, %s177, [#allocation21]
    $region53: #{_fwd.1} parent=1 // pred_fallthru
      _
    // Predicated region
    $region54: #{_fwd.1} parent=1 // pred_check
      _
    $region55: #{_fwd.1} parent=1 // pred_check_branch
      %181 = sbr.rel (0) target = $region57
    $region56: #{_fwd.1} parent=1 // pred_region
      %183 = vsyncadd [#allocation21], 0
      %s185 = sshll.u32 %s13, 4
      %s186 = int_to_ptr.hbm [resolvable:$true] %s185
      %s187 = sshll.u32 [#allocation22], 4
      %s188 = int_to_ptr.vmem [resolvable:$true] %s187
      %190 = dma.hbm_to_vmem [thread:$0]  %s186, 16, %s188, [#allocation21]
    $region57: #{_fwd.1} parent=1 // pred_fallthru
      _
    // Predicated region
    $region58: #{_fwd.1} parent=1 // pred_check
      _
    $region59: #{_fwd.1} parent=1 // pred_check_branch
      %192 = sbr.rel (0) target = $region61
    $region60: #{_fwd.1} parent=1 // pred_region
      %194 = vsyncadd [#allocation24], 0
      %s196 = sshll.u32 %s14, 4
      %s197 = int_to_ptr.hbm [resolvable:$true] %s196
      %s198 = sshll.u32 [#allocation23], 4
      %s199 = int_to_ptr.vmem [resolvable:$true] %s198
      %201 = dma.hbm_to_vmem [thread:$0]  %s197, 16, %s199, [#allocation24]
    $region61: #{_fwd.1} parent=1 // pred_fallthru
      _
    // Predicated region
    $region62: #{_fwd.1} parent=1 // pred_check
      _
    $region63: #{_fwd.1} parent=1 // pred_check_branch
      %203 = sbr.rel (0) target = $region65
    $region64: #{_fwd.1} parent=1 // pred_region
      %205 = vsyncadd [#allocation24], 0
      %s206 = sshll.u32 %s15, 4
      %s207 = int_to_ptr.hbm [resolvable:$true] %s206
      %s208 = sshll.u32 [#allocation25], 4
      %s209 = int_to_ptr.vmem [resolvable:$true] %s208
      %214 = dma.hbm_to_vmem [thread:$0]  %s207, 256, %s209, [#allocation24], 64, 64, 4
    $region65: #{_fwd.1} parent=1 // pred_fallthru
      _
    // Predicated region
    $region66: #{_fwd.1} parent=1 // pred_check
      _
    $region67: #{_fwd.1} parent=1 // pred_check_branch
      %216 = sbr.rel (0) target = $region69
    $region68: #{_fwd.1} parent=1 // pred_region
      %218 = vsyncadd [#allocation27], 0
      %s220 = sshll.u32 %s16, 4
      %s221 = int_to_ptr.hbm [resolvable:$true] %s220
      %s222 = sshll.u32 [#allocation26], 4
      %s223 = int_to_ptr.vmem [resolvable:$true] %s222
      %225 = dma.hbm_to_vmem [thread:$0]  %s221, 16, %s223, [#allocation27]
    $region69: #{_fwd.1} parent=1 // pred_fallthru
      _
    // Predicated region
    $region70: #{_fwd.1} parent=1 // pred_check
      _
    $region71: #{_fwd.1} parent=1 // pred_check_branch
      %227 = sbr.rel (0) target = $region73
    $region72: #{_fwd.1} parent=1 // pred_region
      _
    $region73: #{_fwd.1} parent=1 // pred_fallthru
      _
    // Predicated region
    $region74: #{_fwd.1} parent=1 // pred_check
      _
    $region75: #{_fwd.1} parent=1 // pred_check_branch
      %229 = sbr.rel (0) target = $region77
    $region76: #{_fwd.1} parent=1 // pred_region
      _
    $region77: #{_fwd.1} parent=1 // pred_fallthru
      _
    // Predicated region
    $region78: #{_fwd.1} parent=1 // pred_check
      _
    $region79: #{_fwd.1} parent=1 // pred_check_branch
      %231 = sbr.rel (0) target = $region81
    $region80: #{_fwd.1} parent=1 // pred_region
      %233 = dma.done [#allocation3], 256
    $region81: #{_fwd.1} parent=1 // pred_fallthru
      _
    // Predicated region
    $region82: #{_fwd.1} parent=1 // pred_check
      _
    $region83: #{_fwd.1} parent=1 // pred_check_branch
      %235 = sbr.rel (0) target = $region85
    $region84: #{_fwd.1} parent=1 // pred_region
      %237 = dma.done [#allocation6], 256
    $region85: #{_fwd.1} parent=1 // pred_fallthru
      _
    // Predicated region
    $region86: #{_fwd.1} parent=1 // pred_check
      _
    $region87: #{_fwd.1} parent=1 // pred_check_branch
      %239 = sbr.rel (0) target = $region89
    $region88: #{_fwd.1} parent=1 // pred_region
      %241 = dma.done [#allocation6], 16
    $region89: #{_fwd.1} parent=1 // pred_fallthru
      _
    // Predicated region
    $region90: #{_fwd.1} parent=1 // pred_check
      _
    $region91: #{_fwd.1} parent=1 // pred_check_branch
      %243 = sbr.rel (0) target = $region93
    $region92: #{_fwd.1} parent=1 // pred_region
      %245 = dma.done [#allocation9], 256
    $region93: #{_fwd.1} parent=1 // pred_fallthru
      _
    // Predicated region
    $region94: #{_fwd.1} parent=1 // pred_check
      _
    $region95: #{_fwd.1} parent=1 // pred_check_branch
      %247 = sbr.rel (0) target = $region97
    $region96: #{_fwd.1} parent=1 // pred_region
      %249 = dma.done [#allocation9], 16
    $region97: #{_fwd.1} parent=1 // pred_fallthru
      _
    // Predicated region
    $region98: #{_fwd.1} parent=1 // pred_check
      _
    $region99: #{_fwd.1} parent=1 // pred_check_branch
      %251 = sbr.rel (0) target = $region101
    $region100: #{_fwd.1} parent=1 // pred_region
      %253 = dma.done [#allocation12], 256
    $region101: #{_fwd.1} parent=1 // pred_fallthru
      _
    // Predicated region
    $region102: #{_fwd.1} parent=1 // pred_check
      _
    $region103: #{_fwd.1} parent=1 // pred_check_branch
      %255 = sbr.rel (0) target = $region105
    $region104: #{_fwd.1} parent=1 // pred_region
      %257 = dma.done [#allocation12], 16
    $region105: #{_fwd.1} parent=1 // pred_fallthru
      _
    // Predicated region
    $region106: #{_fwd.1} parent=1 // pred_check
      _
    $region107: #{_fwd.1} parent=1 // pred_check_branch
      %259 = sbr.rel (0) target = $region109
    $region108: #{_fwd.1} parent=1 // pred_region
      %261 = dma.done [#allocation15], 16
    $region109: #{_fwd.1} parent=1 // pred_fallthru
      _
    // Predicated region
    $region110: #{_fwd.1} parent=1 // pred_check
      _
    $region111: #{_fwd.1} parent=1 // pred_check_branch
      %263 = sbr.rel (0) target = $region113
    $region112: #{_fwd.1} parent=1 // pred_region
      %265 = dma.done [#allocation15], 16
    $region113: #{_fwd.1} parent=1 // pred_fallthru
      _
    // Predicated region
    $region114: #{_fwd.1} parent=1 // pred_check
      _
    $region115: #{_fwd.1} parent=1 // pred_check_branch
      %267 = sbr.rel (0) target = $region117
    $region116: #{_fwd.1} parent=1 // pred_region
      %269 = dma.done [#allocation18], 256
    $region117: #{_fwd.1} parent=1 // pred_fallthru
      _
    // Predicated region
    $region118: #{_fwd.1} parent=1 // pred_check
      _
    $region119: #{_fwd.1} parent=1 // pred_check_branch
      %271 = sbr.rel (0) target = $region121
    $region120: #{_fwd.1} parent=1 // pred_region
      %273 = dma.done [#allocation18], 16
    $region121: #{_fwd.1} parent=1 // pred_fallthru
      _
    // Predicated region
    $region122: #{_fwd.1} parent=1 // pred_check
      _
    $region123: #{_fwd.1} parent=1 // pred_check_branch
      %275 = sbr.rel (0) target = $region125
    $region124: #{_fwd.1} parent=1 // pred_region
      %277 = dma.done [#allocation21], 16
    $region125: #{_fwd.1} parent=1 // pred_fallthru
      _
    // Predicated region
    $region126: #{_fwd.1} parent=1 // pred_check
      _
    $region127: #{_fwd.1} parent=1 // pred_check_branch
      %279 = sbr.rel (0) target = $region129
    $region128: #{_fwd.1} parent=1 // pred_region
      %281 = dma.done [#allocation21], 16
    $region129: #{_fwd.1} parent=1 // pred_fallthru
      _
    // Predicated region
    $region130: #{_fwd.1} parent=1 // pred_check
      _
    $region131: #{_fwd.1} parent=1 // pred_check_branch
      %283 = sbr.rel (0) target = $region133
    $region132: #{_fwd.1} parent=1 // pred_region
      %285 = dma.done [#allocation24], 16
    $region133: #{_fwd.1} parent=1 // pred_fallthru
      _
    // Predicated region
    $region134: #{_fwd.1} parent=1 // pred_check
      _
    $region135: #{_fwd.1} parent=1 // pred_check_branch
      %287 = sbr.rel (0) target = $region137
    $region136: #{_fwd.1} parent=1 // pred_region
      %289 = dma.done [#allocation24], 256
    $region137: #{_fwd.1} parent=1 // pred_fallthru
      _
    // Predicated region
    $region138: #{_fwd.1} parent=1 // pred_check
      _
    $region139: #{_fwd.1} parent=1 // pred_check_branch
      %291 = sbr.rel (0) target = $region141
    $region140: #{_fwd.1} parent=1 // pred_region
      %293 = dma.done [#allocation27], 16
    $region141: #{_fwd.1} parent=1 // pred_fallthru
      _
    %v295 = vld [vmem:[#allocation2] sm:$0xff]
    %v296 = vld [vmem:[#allocation2 + $0x8] sm:$0xff]
    %v297 = vpack.c.bf16 %v296, %v295
    %v298 = vld [vmem:[#allocation5] sm:$0xf]
    %v299 = vld [vmem:[#allocation5 + $0x4] sm:$0xf]
    %v300 = vld [vmem:[#allocation5 + $0x8] sm:$0xf]
    %v301 = vld [vmem:[#allocation5 + $0xc] sm:$0xf]
    %v302 = vld [vmem:[#allocation7] sm:$0x1]
    %v304 = vperm.slane %v302, 0
    %v310 = vunpack.c.l.b16 %v298
    %v311 = vunpack.c.l.b16 %v299
    %v312 = vunpack.c.l.b16 %v300
    %v313 = vunpack.c.l.b16 %v301
    %v314 = vpack.c.b16 %v311, %v310
    %v315 = vpack.c.b16 %v313, %v312
    %vm318 = vcmask 261120
    %v320 = vsel %vm318, %v297, 0
    %322 = vmatpush.bf16.msra.mxu0 0
    %323 = vmatpush.bf16.msra.mxu0 0
    %324 = vmatpush.bf16.msra.mxu0 0
    %325 = vmatpush.bf16.msra.mxu0 0
    %326 = vmatpush.bf16.msra.mxu0 0
    %327 = vmatpush.bf16.msra.mxu0 0
    %328 = vmatpush.bf16.msra.mxu0 %v315
    %329 = vmatpush.bf16.msra.mxu0 %v314
    %330 = vmatmul.bf16.gmra.mxu0 %v320
    %v331 = vpop.f32.mrf.mxu0
    %v332 = vadd.f32 %v304, %v331
    %v333 = vpop.f32.mrf.mxu0
    %v334 = vadd.f32 %v304, %v333
    %335 = vdwg.mxu0
    %v336 = vpack.c.bf16 %v334, %v332
    %v337 = vld [vmem:[#allocation8] sm:$0xf]
    %v338 = vld [vmem:[#allocation8 + $0x4] sm:$0xf]
    %v339 = vld [vmem:[#allocation8 + $0x8] sm:$0xf]
    %v340 = vld [vmem:[#allocation8 + $0xc] sm:$0xf]
    %v341 = vld [vmem:[#allocation10] sm:$0x1]
    %v343 = vperm.slane %v341, 0
    %v349 = vunpack.c.l.b16 %v337
    %v350 = vunpack.c.l.b16 %v338
    %v351 = vunpack.c.l.b16 %v339
    %v352 = vunpack.c.l.b16 %v340
    %v353 = vpack.c.b16 %v350, %v349
    %v354 = vpack.c.b16 %v352, %v351
    %v358 = vsel %vm318, %v336, 0
    %360 = vmatpush.bf16.msra.mxu0 0
    %361 = vmatpush.bf16.msra.mxu0 0
    %362 = vmatpush.bf16.msra.mxu0 0
    %363 = vmatpush.bf16.msra.mxu0 0
    %364 = vmatpush.bf16.msra.mxu0 0
    %365 = vmatpush.bf16.msra.mxu0 0
    %366 = vmatpush.bf16.msra.mxu0 %v354
    %367 = vmatpush.bf16.msra.mxu0 %v353
    %368 = vmatmul.bf16.gmra.mxu0 %v358
    %v369 = vpop.f32.mrf.mxu0
    %v370 = vadd.f32 %v343, %v369
    %v371 = vpop.f32.mrf.mxu0
    %v372 = vadd.f32 %v343, %v371
    %373 = vdwg.mxu0
    %v374 = vpack.c.bf16 %v370, %v370
    %v375 = vpack.c.bf16 %v372, %v372
    %v377 = vunpack.c.l.b16 %v374
    %v378 = vpack.c.b16 %v377, %v377
    %379 = vrot.lane.b32.xlu0 %v378, 96
    %v380 = vpop.permute.xlu0 %379
    %vm381 = vcmask 64512
    %v383 = vsel %vm381, %v374, 0
    %v386 = vsel %vm381, %v380, 0
    %388 = vmatpush.bf16.xpose.msra.mxu0 0
    %389 = vmatpush.bf16.xpose.msra.mxu0 0
    %390 = vmatpush.bf16.xpose.msra.mxu0 0
    %391 = vmatpush.bf16.xpose.msra.mxu0 0
    %392 = vmatpush.bf16.xpose.msra.mxu0 0
    %393 = vmatpush.bf16.xpose.msra.mxu0 0
    %394 = vmatpush.bf16.xpose.msra.mxu0 0
    %395 = vmatpush.bf16.xpose.msra.mxu0 %v386
    %396 = vmatmul.bf16.gmra.mxu0 %v383
    %v397 = vpop.f32.mrf.mxu0
    %v398 = vadd.f32 0.0, %v397
    %v399 = vpop.f32.mrf.mxu0
    %400 = vdwg.mxu0
    %v402 = vunpack.c.l.b16 %v375
    %v403 = vpack.c.b16 %v402, %v402
    %404 = vrot.lane.b32.xlu0 %v403, 96
    %v405 = vpop.permute.xlu0 %404
    %v407 = vsel %vm381, %v375, 0
    %v410 = vsel %vm381, %v405, 0
    %412 = vmatpush.bf16.xpose.msra.mxu0 0
    %413 = vmatpush.bf16.xpose.msra.mxu0 0
    %414 = vmatpush.bf16.xpose.msra.mxu0 0
    %415 = vmatpush.bf16.xpose.msra.mxu0 0
    %416 = vmatpush.bf16.xpose.msra.mxu0 0
    %417 = vmatpush.bf16.xpose.msra.mxu0 0
    %418 = vmatpush.bf16.xpose.msra.mxu0 0
    %419 = vmatpush.bf16.xpose.msra.mxu0 %v410
    %420 = vmatmul.bf16.gmra.mxu0 %v407
    %v421 = vpop.f32.mrf.mxu0
    %v422 = vadd.f32 0.0, %v421
    %v423 = vpop.f32.mrf.mxu0
    %424 = vdwg.mxu0
    %v425 = vsel %vm381, %v398, -inf
    %426 = vmax.xlane.f32.xlu0 %v425
    %v427 = vpop.xlane.xlu0 %426
    %v428 = vsel %vm381, %v422, -inf
    %429 = vmax.xlane.f32.xlu0 %v428
    %v430 = vpop.xlane.xlu0 %429
    %v431 = vsub.f32 %v398, %v427
    %v432 = vsub.f32 %v422, %v430
    %v433 = vmul.f32 %v431, 1.442695
    %v434 = vpow.pop %v433
    %v435 = vmul.f32 %v432, 1.442695
    %v436 = vpow.pop %v435
    %v437 = vsel %vm381, %v434, 0.0
    %438 = vadd.xlane.f32.xlu0 %v437
    %v439 = vpop.xlane.xlu0 %438
    %v440 = vsel %vm381, %v436, 0.0
    %441 = vadd.xlane.f32.xlu0 %v440
    %v442 = vpop.xlane.xlu0 %441
    %v443 = vrcp.pop %v439
    %v444 = vrcp.pop %v442
    %v445 = vmul.f32 %v434, %v443
    %v446 = vmul.f32 %v436, %v444
    %v447 = vpack.c.bf16 %v445, %v445
    %v448 = vpack.c.bf16 %v446, %v446
    %449 = vrot.lane.b32.xlu0 %v378, 64
    %v450 = vpop.permute.xlu0 %449
    %v452 = vsel %vm381, %v447, 0
    %vm454 = vcmask 1043456
    %v456 = vsel %vm454, %v450, 0
    %458 = vmatpush.bf16.msra.mxu0 0
    %459 = vmatpush.bf16.msra.mxu0 0
    %460 = vmatpush.bf16.msra.mxu0 0
    %461 = vmatpush.bf16.msra.mxu0 0
    %462 = vmatpush.bf16.msra.mxu0 0
    %463 = vmatpush.bf16.msra.mxu0 0
    %464 = vmatpush.bf16.msra.mxu0 0
    %465 = vmatpush.bf16.msra.mxu0 %v456
    %466 = vmatmul.bf16.gmra.mxu0 %v452
    %v467 = vpop.f32.mrf.mxu0
    %v468 = vadd.f32 0.0, %v467
    %v469 = vpop.f32.mrf.mxu0
    %470 = vdwg.mxu0
    %471 = vrot.lane.b32.xlu0 %v403, 64
    %v472 = vpop.permute.xlu0 %471
    %v474 = vsel %vm381, %v448, 0
    %v477 = vsel %vm454, %v472, 0
    %479 = vmatpush.bf16.msra.mxu0 0
    %480 = vmatpush.bf16.msra.mxu0 0
    %481 = vmatpush.bf16.msra.mxu0 0
    %482 = vmatpush.bf16.msra.mxu0 0
    %483 = vmatpush.bf16.msra.mxu0 0
    %484 = vmatpush.bf16.msra.mxu0 0
    %485 = vmatpush.bf16.msra.mxu0 0
    %486 = vmatpush.bf16.msra.mxu0 %v477
    %487 = vmatmul.bf16.gmra.mxu0 %v474
    %v488 = vpop.f32.mrf.mxu0
    %v489 = vadd.f32 0.0, %v488
    %v490 = vpop.f32.mrf.mxu0
    %491 = vdwg.mxu0
    %492 = vrot.lane.b32.xlu0 %v378, 120
    %v493 = vpop.permute.xlu0 %492
    %494 = vrot.lane.b32.xlu0 %v378, 88
    %v495 = vpop.permute.xlu0 %494
    %v497 = vsel %vm381, %v493, 0
    %v500 = vsel %vm381, %v495, 0
    %502 = vmatpush.bf16.xpose.msra.mxu0 0
    %503 = vmatpush.bf16.xpose.msra.mxu0 0
    %504 = vmatpush.bf16.xpose.msra.mxu0 0
    %505 = vmatpush.bf16.xpose.msra.mxu0 0
    %506 = vmatpush.bf16.xpose.msra.mxu0 0
    %507 = vmatpush.bf16.xpose.msra.mxu0 0
    %508 = vmatpush.bf16.xpose.msra.mxu0 0
    %509 = vmatpush.bf16.xpose.msra.mxu0 %v500
    %510 = vmatmul.bf16.gmra.mxu0 %v497
    %v511 = vpop.f32.mrf.mxu0
    %v512 = vadd.f32 0.0, %v511
    %v513 = vpop.f32.mrf.mxu0
    %514 = vdwg.mxu0
    %515 = vrot.lane.b32.xlu0 %v403, 120
    %v516 = vpop.permute.xlu0 %515
    %517 = vrot.lane.b32.xlu0 %v403, 88
    %v518 = vpop.permute.xlu0 %517
    %v520 = vsel %vm381, %v516, 0
    %v523 = vsel %vm381, %v518, 0
    %525 = vmatpush.bf16.xpose.msra.mxu0 0
    %526 = vmatpush.bf16.xpose.msra.mxu0 0
    %527 = vmatpush.bf16.xpose.msra.mxu0 0
    %528 = vmatpush.bf16.xpose.msra.mxu0 0
    %529 = vmatpush.bf16.xpose.msra.mxu0 0
    %530 = vmatpush.bf16.xpose.msra.mxu0 0
    %531 = vmatpush.bf16.xpose.msra.mxu0 0
    %532 = vmatpush.bf16.xpose.msra.mxu0 %v523
    %533 = vmatmul.bf16.gmra.mxu0 %v520
    %v534 = vpop.f32.mrf.mxu0
    %v535 = vadd.f32 0.0, %v534
    %v536 = vpop.f32.mrf.mxu0
    %537 = vdwg.mxu0
    %v538 = vsel %vm381, %v512, -inf
    %539 = vmax.xlane.f32.xlu0 %v538
    %v540 = vpop.xlane.xlu0 %539
    %v541 = vsel %vm381, %v535, -inf
    %542 = vmax.xlane.f32.xlu0 %v541
    %v543 = vpop.xlane.xlu0 %542
    %v544 = vsub.f32 %v512, %v540
    %v545 = vsub.f32 %v535, %v543
    %v546 = vmul.f32 %v544, 1.442695
    %v547 = vpow.pop %v546
    %v548 = vmul.f32 %v545, 1.442695
    %v549 = vpow.pop %v548
    %v550 = vsel %vm381, %v547, 0.0
    %551 = vadd.xlane.f32.xlu0 %v550
    %v552 = vpop.xlane.xlu0 %551
    %v553 = vsel %vm381, %v549, 0.0
    %554 = vadd.xlane.f32.xlu0 %v553
    %v555 = vpop.xlane.xlu0 %554
    %v556 = vrcp.pop %v552
    %v557 = vrcp.pop %v555
    %v558 = vmul.f32 %v547, %v556
    %v559 = vmul.f32 %v549, %v557
    %v560 = vpack.c.bf16 %v558, %v558
    %v561 = vpack.c.bf16 %v559, %v559
    %562 = vrot.lane.b32.xlu0 %v378, 56
    %v563 = vpop.permute.xlu0 %562
    %v565 = vsel %vm381, %v560, 0
    %v568 = vsel %vm454, %v563, 0
    %570 = vmatpush.bf16.msra.mxu0 0
    %571 = vmatpush.bf16.msra.mxu0 0
    %572 = vmatpush.bf16.msra.mxu0 0
    %573 = vmatpush.bf16.msra.mxu0 0
    %574 = vmatpush.bf16.msra.mxu0 0
    %575 = vmatpush.bf16.msra.mxu0 0
    %576 = vmatpush.bf16.msra.mxu0 0
    %577 = vmatpush.bf16.msra.mxu0 %v568
    %578 = vmatmul.bf16.gmra.mxu0 %v565
    %v579 = vpop.f32.mrf.mxu0
    %v580 = vadd.f32 0.0, %v579
    %v581 = vpop.f32.mrf.mxu0
    %582 = vdwg.mxu0
    %583 = vrot.lane.b32.xlu0 %v403, 56
    %v584 = vpop.permute.xlu0 %583
    %v586 = vsel %vm381, %v561, 0
    %v589 = vsel %vm454, %v584, 0
    %591 = vmatpush.bf16.msra.mxu0 0
    %592 = vmatpush.bf16.msra.mxu0 0
    %593 = vmatpush.bf16.msra.mxu0 0
    %594 = vmatpush.bf16.msra.mxu0 0
    %595 = vmatpush.bf16.msra.mxu0 0
    %596 = vmatpush.bf16.msra.mxu0 0
    %597 = vmatpush.bf16.msra.mxu0 0
    %598 = vmatpush.bf16.msra.mxu0 %v589
    %599 = vmatmul.bf16.gmra.mxu0 %v586
    %v600 = vpop.f32.mrf.mxu0
    %v601 = vadd.f32 0.0, %v600
    %v602 = vpop.f32.mrf.mxu0
    %603 = vdwg.mxu0
    %604 = vrot.lane.b32.xlu0 %v378, 112
    %v605 = vpop.permute.xlu0 %604
    %606 = vrot.lane.b32.xlu0 %v378, 80
    %v607 = vpop.permute.xlu0 %606
    %v609 = vsel %vm381, %v605, 0
    %v612 = vsel %vm381, %v607, 0
    %614 = vmatpush.bf16.xpose.msra.mxu0 0
    %615 = vmatpush.bf16.xpose.msra.mxu0 0
    %616 = vmatpush.bf16.xpose.msra.mxu0 0
    %617 = vmatpush.bf16.xpose.msra.mxu0 0
    %618 = vmatpush.bf16.xpose.msra.mxu0 0
    %619 = vmatpush.bf16.xpose.msra.mxu0 0
    %620 = vmatpush.bf16.xpose.msra.mxu0 0
    %621 = vmatpush.bf16.xpose.msra.mxu0 %v612
    %622 = vmatmul.bf16.gmra.mxu0 %v609
    %v623 = vpop.f32.mrf.mxu0
    %v624 = vadd.f32 0.0, %v623
    %v625 = vpop.f32.mrf.mxu0
    %626 = vdwg.mxu0
    %627 = vrot.lane.b32.xlu0 %v403, 112
    %v628 = vpop.permute.xlu0 %627
    %629 = vrot.lane.b32.xlu0 %v403, 80
    %v630 = vpop.permute.xlu0 %629
    %v632 = vsel %vm381, %v628, 0
    %v635 = vsel %vm381, %v630, 0
    %637 = vmatpush.bf16.xpose.msra.mxu0 0
    %638 = vmatpush.bf16.xpose.msra.mxu0 0
    %639 = vmatpush.bf16.xpose.msra.mxu0 0
    %640 = vmatpush.bf16.xpose.msra.mxu0 0
    %641 = vmatpush.bf16.xpose.msra.mxu0 0
    %642 = vmatpush.bf16.xpose.msra.mxu0 0
    %643 = vmatpush.bf16.xpose.msra.mxu0 0
    %644 = vmatpush.bf16.xpose.msra.mxu0 %v635
    %645 = vmatmul.bf16.gmra.mxu0 %v632
    %v646 = vpop.f32.mrf.mxu0
    %v647 = vadd.f32 0.0, %v646
    %v648 = vpop.f32.mrf.mxu0
    %649 = vdwg.mxu0
    %v650 = vsel %vm381, %v624, -inf
    %651 = vmax.xlane.f32.xlu0 %v650
    %v652 = vpop.xlane.xlu0 %651
    %v653 = vsel %vm381, %v647, -inf
    %654 = vmax.xlane.f32.xlu0 %v653
    %v655 = vpop.xlane.xlu0 %654
    %v656 = vsub.f32 %v624, %v652
    %v657 = vsub.f32 %v647, %v655
    %v658 = vmul.f32 %v656, 1.442695
    %v659 = vpow.pop %v658
    %v660 = vmul.f32 %v657, 1.442695
    %v661 = vpow.pop %v660
    %v662 = vsel %vm381, %v659, 0.0
    %663 = vadd.xlane.f32.xlu0 %v662
    %v664 = vpop.xlane.xlu0 %663
    %v665 = vsel %vm381, %v661, 0.0
    %666 = vadd.xlane.f32.xlu0 %v665
    %v667 = vpop.xlane.xlu0 %666
    %v668 = vrcp.pop %v664
    %v669 = vrcp.pop %v667
    %v670 = vmul.f32 %v659, %v668
    %v671 = vmul.f32 %v661, %v669
    %v672 = vpack.c.bf16 %v670, %v670
    %v673 = vpack.c.bf16 %v671, %v671
    %674 = vrot.lane.b32.xlu0 %v378, 48
    %v675 = vpop.permute.xlu0 %674
    %v677 = vsel %vm381, %v672, 0
    %v680 = vsel %vm454, %v675, 0
    %682 = vmatpush.bf16.msra.mxu0 0
    %683 = vmatpush.bf16.msra.mxu0 0
    %684 = vmatpush.bf16.msra.mxu0 0
    %685 = vmatpush.bf16.msra.mxu0 0
    %686 = vmatpush.bf16.msra.mxu0 0
    %687 = vmatpush.bf16.msra.mxu0 0
    %688 = vmatpush.bf16.msra.mxu0 0
    %689 = vmatpush.bf16.msra.mxu0 %v680
    %690 = vmatmul.bf16.gmra.mxu0 %v677
    %v691 = vpop.f32.mrf.mxu0
    %v692 = vadd.f32 0.0, %v691
    %v693 = vpop.f32.mrf.mxu0
    %694 = vdwg.mxu0
    %695 = vrot.lane.b32.xlu0 %v403, 48
    %v696 = vpop.permute.xlu0 %695
    %v698 = vsel %vm381, %v673, 0
    %v701 = vsel %vm454, %v696, 0
    %703 = vmatpush.bf16.msra.mxu0 0
    %704 = vmatpush.bf16.msra.mxu0 0
    %705 = vmatpush.bf16.msra.mxu0 0
    %706 = vmatpush.bf16.msra.mxu0 0
    %707 = vmatpush.bf16.msra.mxu0 0
    %708 = vmatpush.bf16.msra.mxu0 0
    %709 = vmatpush.bf16.msra.mxu0 0
    %710 = vmatpush.bf16.msra.mxu0 %v701
    %711 = vmatmul.bf16.gmra.mxu0 %v698
    %v712 = vpop.f32.mrf.mxu0
    %v713 = vadd.f32 0.0, %v712
    %v714 = vpop.f32.mrf.mxu0
    %715 = vdwg.mxu0
    %716 = vrot.lane.b32.xlu0 %v378, 104
    %v717 = vpop.permute.xlu0 %716
    %718 = vrot.lane.b32.xlu0 %v378, 72
    %v719 = vpop.permute.xlu0 %718
    %v721 = vsel %vm381, %v717, 0
    %v724 = vsel %vm381, %v719, 0
    %726 = vmatpush.bf16.xpose.msra.mxu0 0
    %727 = vmatpush.bf16.xpose.msra.mxu0 0
    %728 = vmatpush.bf16.xpose.msra.mxu0 0
    %729 = vmatpush.bf16.xpose.msra.mxu0 0
    %730 = vmatpush.bf16.xpose.msra.mxu0 0
    %731 = vmatpush.bf16.xpose.msra.mxu0 0
    %732 = vmatpush.bf16.xpose.msra.mxu0 0
    %733 = vmatpush.bf16.xpose.msra.mxu0 %v724
    %734 = vmatmul.bf16.gmra.mxu0 %v721
    %v735 = vpop.f32.mrf.mxu0
    %v736 = vadd.f32 0.0, %v735
    %v737 = vpop.f32.mrf.mxu0
    %738 = vdwg.mxu0
    %739 = vrot.lane.b32.xlu0 %v403, 104
    %v740 = vpop.permute.xlu0 %739
    %741 = vrot.lane.b32.xlu0 %v403, 72
    %v742 = vpop.permute.xlu0 %741
    %v744 = vsel %vm381, %v740, 0
    %v747 = vsel %vm381, %v742, 0
    %749 = vmatpush.bf16.xpose.msra.mxu0 0
    %750 = vmatpush.bf16.xpose.msra.mxu0 0
    %751 = vmatpush.bf16.xpose.msra.mxu0 0
    %752 = vmatpush.bf16.xpose.msra.mxu0 0
    %753 = vmatpush.bf16.xpose.msra.mxu0 0
    %754 = vmatpush.bf16.xpose.msra.mxu0 0
    %755 = vmatpush.bf16.xpose.msra.mxu0 0
    %756 = vmatpush.bf16.xpose.msra.mxu0 %v747
    %757 = vmatmul.bf16.gmra.mxu0 %v744
    %v758 = vpop.f32.mrf.mxu0
    %v759 = vadd.f32 0.0, %v758
    %v760 = vpop.f32.mrf.mxu0
    %761 = vdwg.mxu0
    %v762 = vsel %vm381, %v736, -inf
    %763 = vmax.xlane.f32.xlu0 %v762
    %v764 = vpop.xlane.xlu0 %763
    %v765 = vsel %vm381, %v759, -inf
    %766 = vmax.xlane.f32.xlu0 %v765
    %v767 = vpop.xlane.xlu0 %766
    %v768 = vsub.f32 %v736, %v764
    %v769 = vsub.f32 %v759, %v767
    %v770 = vmul.f32 %v768, 1.442695
    %v771 = vpow.pop %v770
    %v772 = vmul.f32 %v769, 1.442695
    %v773 = vpow.pop %v772
    %v774 = vsel %vm381, %v771, 0.0
    %775 = vadd.xlane.f32.xlu0 %v774
    %v776 = vpop.xlane.xlu0 %775
    %v777 = vsel %vm381, %v773, 0.0
    %778 = vadd.xlane.f32.xlu0 %v777
    %v779 = vpop.xlane.xlu0 %778
    %v780 = vrcp.pop %v776
    %v781 = vrcp.pop %v779
    %v782 = vmul.f32 %v771, %v780
    %v783 = vmul.f32 %v773, %v781
    %v784 = vpack.c.bf16 %v782, %v782
    %v785 = vpack.c.bf16 %v783, %v783
    %786 = vrot.lane.b32.xlu0 %v378, 40
    %v787 = vpop.permute.xlu0 %786
    %v789 = vsel %vm381, %v784, 0
    %v792 = vsel %vm454, %v787, 0
    %794 = vmatpush.bf16.msra.mxu0 0
    %795 = vmatpush.bf16.msra.mxu0 0
    %796 = vmatpush.bf16.msra.mxu0 0
    %797 = vmatpush.bf16.msra.mxu0 0
    %798 = vmatpush.bf16.msra.mxu0 0
    %799 = vmatpush.bf16.msra.mxu0 0
    %800 = vmatpush.bf16.msra.mxu0 0
    %801 = vmatpush.bf16.msra.mxu0 %v792
    %802 = vmatmul.bf16.gmra.mxu0 %v789
    %v803 = vpop.f32.mrf.mxu0
    %v804 = vadd.f32 0.0, %v803
    %v805 = vpop.f32.mrf.mxu0
    %806 = vdwg.mxu0
    %807 = vrot.lane.b32.xlu0 %v403, 40
    %v808 = vpop.permute.xlu0 %807
    %v810 = vsel %vm381, %v785, 0
    %v813 = vsel %vm454, %v808, 0
    %815 = vmatpush.bf16.msra.mxu0 0
    %816 = vmatpush.bf16.msra.mxu0 0
    %817 = vmatpush.bf16.msra.mxu0 0
    %818 = vmatpush.bf16.msra.mxu0 0
    %819 = vmatpush.bf16.msra.mxu0 0
    %820 = vmatpush.bf16.msra.mxu0 0
    %821 = vmatpush.bf16.msra.mxu0 0
    %822 = vmatpush.bf16.msra.mxu0 %v813
    %823 = vmatmul.bf16.gmra.mxu0 %v810
    %v824 = vpop.f32.mrf.mxu0
    %v825 = vadd.f32 0.0, %v824
    %v826 = vpop.f32.mrf.mxu0
    %827 = vdwg.mxu0
    %830 = vrot.lane.b32.xlu0 %v580, 8
    %v831 = vpop.permute.xlu0 %830
    %832 = vrot.lane.b32.xlu0 %v601, 8
    %v833 = vpop.permute.xlu0 %832
    %838 = vrot.lane.b32.xlu0 %v692, 16
    %v839 = vpop.permute.xlu0 %838
    %840 = vrot.lane.b32.xlu0 %v713, 16
    %v841 = vpop.permute.xlu0 %840
    %846 = vrot.lane.b32.xlu0 %v804, 24
    %v847 = vpop.permute.xlu0 %846
    %848 = vrot.lane.b32.xlu0 %v825, 24
    %v849 = vpop.permute.xlu0 %848
    %v852 = vsel %vm381, %v468, %v831
    %v853 = vsel %vm381, %v489, %v833
    %vm854 = vcmask 130048
    %v855 = vsel %vm854, %v852, %v839
    %v856 = vsel %vm854, %v853, %v841
    %vm857 = vcmask 195584
    %v858 = vsel %vm857, %v855, %v847
    %v859 = vsel %vm857, %v856, %v849
    %v860 = vpack.c.bf16 %v859, %v858
    %v861 = vld [vmem:[#allocation11] sm:$0xf]
    %v862 = vld [vmem:[#allocation11 + $0x4] sm:$0xf]
    %v863 = vld [vmem:[#allocation11 + $0x8] sm:$0xf]
    %v864 = vld [vmem:[#allocation11 + $0xc] sm:$0xf]
    %v865 = vld [vmem:[#allocation13] sm:$0x1]
    %v867 = vperm.slane %v865, 0
    %v873 = vunpack.c.l.b16 %v861
    %v874 = vunpack.c.l.b16 %v862
    %v875 = vunpack.c.l.b16 %v863
    %v876 = vunpack.c.l.b16 %v864
    %v877 = vpack.c.b16 %v874, %v873
    %v878 = vpack.c.b16 %v876, %v875
    %v882 = vsel %vm318, %v860, 0
    %884 = vmatpush.bf16.msra.mxu0 0
    %885 = vmatpush.bf16.msra.mxu0 0
    %886 = vmatpush.bf16.msra.mxu0 0
    %887 = vmatpush.bf16.msra.mxu0 0
    %888 = vmatpush.bf16.msra.mxu0 0
    %889 = vmatpush.bf16.msra.mxu0 0
    %890 = vmatpush.bf16.msra.mxu0 %v878
    %891 = vmatpush.bf16.msra.mxu0 %v877
    %892 = vmatmul.bf16.gmra.mxu0 %v882
    %v893 = vpop.f32.mrf.mxu0
    %v894 = vadd.f32 %v867, %v893
    %v895 = vpop.f32.mrf.mxu0
    %v896 = vadd.f32 %v867, %v895
    %897 = vdwg.mxu0
    %v898 = vadd.f32 %v332, %v894
    %v899 = vadd.f32 %v334, %v896
    %v900 = vld [vmem:[#allocation14] sm:$0x1]
    %v901 = vld [vmem:[#allocation16] sm:$0x1]
    %v902 = vsel %vm318, %v898, 0.0
    %903 = vadd.xlane.f32.xlu0 %v902
    %v904 = vpop.xlane.xlu0 %903
    %v905 = vsel %vm318, %v899, 0.0
    %906 = vadd.xlane.f32.xlu0 %v905
    %v907 = vpop.xlane.xlu0 %906
    %v908 = vrcp.pop 32.0
    %v909 = vmul.f32 32.0, %v908
    %v910 = vsub.f32 1.0, %v909
    %v911 = vmul.f32 %v908, %v910
    %v912 = vadd.f32 %v908, %v911
    %vm913 = vweird.f32 %v908
    %v914 = vsel %vm913, %v908, %v912
    %v915 = vmul.f32 %v904, %v914
    %v916 = vmul.f32 %v907, %v914
    %v917 = vsub.f32 %v898, %v915
    %v918 = vsub.f32 %v899, %v916
    %v919 = vmul.f32 %v917, %v917
    %v920 = vmul.f32 %v918, %v918
    %v921 = vsel %vm318, %v919, 0.0
    %922 = vadd.xlane.f32.xlu0 %v921
    %v923 = vpop.xlane.xlu0 %922
    %v924 = vsel %vm318, %v920, 0.0
    %925 = vadd.xlane.f32.xlu0 %v924
    %v926 = vpop.xlane.xlu0 %925
    %v927 = vmul.f32 %v923, %v914
    %v928 = vmul.f32 %v926, %v914
    %v929 = vadd.f32 %v927, 1e-05
    %v930 = vadd.f32 %v928, 1e-05
    %v931 = vrsqrt.pop %v929
    %v932 = vmul.f32 %v931, %v929
    %v933 = vmul.f32 %v932, %v931
    %v934 = vmul.f32 0.5, %v933
    %v935 = vsub.f32 1.5, %v934
    %v936 = vmul.f32 %v931, %v935
    %vm937 = vweird.f32 %v929
    %vm938 = vweird.f32 %v931
    %vm939 = vmor %vm937, %vm938
    %v940 = vsel %vm939, %v931, %v936
    %v941 = vrsqrt.pop %v930
    %v942 = vmul.f32 %v941, %v930
    %v943 = vmul.f32 %v942, %v941
    %v944 = vmul.f32 0.5, %v943
    %v945 = vsub.f32 1.5, %v944
    %v946 = vmul.f32 %v941, %v945
    %vm947 = vweird.f32 %v930
    %vm948 = vweird.f32 %v941
    %vm949 = vmor %vm947, %vm948
    %v950 = vsel %vm949, %v941, %v946
    %v951 = vmul.f32 %v917, %v940
    %v952 = vmul.f32 %v918, %v950
    %v954 = vperm.slane %v900, 0
    %v956 = vmul.f32 %v951, %v954
    %v957 = vmul.f32 %v952, %v954
    %v959 = vperm.slane %v901, 0
    %v961 = vadd.f32 %v956, %v959
    %v962 = vadd.f32 %v957, %v959
    %v963 = vpack.c.bf16 %v962, %v961
    %v964 = vld [vmem:[#allocation17] sm:$0xf]
    %v965 = vld [vmem:[#allocation17 + $0x4] sm:$0xf]
    %v966 = vld [vmem:[#allocation17 + $0x8] sm:$0xf]
    %v967 = vld [vmem:[#allocation17 + $0xc] sm:$0xf]
    %v968 = vld [vmem:[#allocation19] sm:$0x1]
    %v970 = vperm.slane %v968, 0
    %v976 = vunpack.c.l.b16 %v964
    %v977 = vunpack.c.l.b16 %v965
    %v978 = vunpack.c.l.b16 %v966
    %v979 = vunpack.c.l.b16 %v967
    %v980 = vpack.c.b16 %v977, %v976
    %v981 = vpack.c.b16 %v979, %v978
    %v985 = vsel %vm318, %v963, 0
    %987 = vmatpush.bf16.msra.mxu0 0
    %988 = vmatpush.bf16.msra.mxu0 0
    %989 = vmatpush.bf16.msra.mxu0 0
    %990 = vmatpush.bf16.msra.mxu0 0
    %991 = vmatpush.bf16.msra.mxu0 0
    %992 = vmatpush.bf16.msra.mxu0 0
    %993 = vmatpush.bf16.msra.mxu0 %v981
    %994 = vmatpush.bf16.msra.mxu0 %v980
    %995 = vmatmul.bf16.gmra.mxu0 %v985
    %v996 = vpop.f32.mrf.mxu0
    %v997 = vadd.f32 %v970, %v996
    %v998 = vpop.f32.mrf.mxu0
    %v999 = vadd.f32 %v970, %v998
    %1000 = vdwg.mxu0
    %v1001 = vmax.f32 %v997, 0.0
    %v1002 = vmax.f32 %v999, 0.0
    %v1003 = vpack.c.bf16 %v1002, %v1001
    %v1004 = vld [vmem:[%s11] sm:$0xf]
    %v1005 = vld [vmem:[%s11 + $0x4] sm:$0xf]
    %v1006 = vld [vmem:[%s11 + $0x8] sm:$0xf]
    %v1007 = vld [vmem:[%s11 + $0xc] sm:$0xf]
    %v1008 = vld [vmem:[%s11 + $0x10] sm:$0xf]
    %v1009 = vld [vmem:[%s11 + $0x14] sm:$0xf]
    %v1010 = vld [vmem:[%s11 + $0x18] sm:$0xf]
    %v1011 = vld [vmem:[%s11 + $0x1c] sm:$0xf]
    %v1012 = vld [vmem:[#allocation20] sm:$0x1]
    %v1014 = vperm.slane %v1012, 0
    %v1024 = vunpack.c.l.b16 %v1004
    %v1025 = vunpack.c.l.b16 %v1005
    %v1026 = vunpack.c.l.b16 %v1006
    %v1027 = vunpack.c.l.b16 %v1007
    %v1028 = vunpack.c.l.b16 %v1008
    %v1029 = vunpack.c.l.b16 %v1009
    %v1030 = vunpack.c.l.b16 %v1010
    %v1031 = vunpack.c.l.b16 %v1011
    %v1032 = vpack.c.b16 %v1025, %v1024
    %v1033 = vpack.c.b16 %v1027, %v1026
    %v1034 = vpack.c.b16 %v1029, %v1028
    %v1035 = vpack.c.b16 %v1031, %v1030
    %vm1040 = vcmask 523264
    %v1042 = vsel %vm1040, %v1003, 0
    %1044 = vmatpush.bf16.msra.mxu0 0
    %1045 = vmatpush.bf16.msra.mxu0 0
    %1046 = vmatpush.bf16.msra.mxu0 0
    %1047 = vmatpush.bf16.msra.mxu0 0
    %1048 = vmatpush.bf16.msra.mxu0 %v1035
    %1049 = vmatpush.bf16.msra.mxu0 %v1034
    %1050 = vmatpush.bf16.msra.mxu0 %v1033
    %1051 = vmatpush.bf16.msra.mxu0 %v1032
    %1052 = vmatmul.bf16.gmra.mxu0 %v1042
    %v1053 = vpop.f32.mrf.mxu0
    %v1054 = vadd.f32 %v1014, %v1053
    %v1055 = vpop.f32.mrf.mxu0
    %v1056 = vadd.f32 %v1014, %v1055
    %1057 = vdwg.mxu0
    %v1058 = vadd.f32 %v961, %v1054
    %v1059 = vadd.f32 %v962, %v1056
    %v1060 = vld [vmem:[#allocation22] sm:$0x1]
    %v1061 = vld [vmem:[#allocation23] sm:$0x1]
    %v1062 = vsel %vm318, %v1058, 0.0
    %1063 = vadd.xlane.f32.xlu0 %v1062
    %v1064 = vpop.xlane.xlu0 %1063
    %v1065 = vsel %vm318, %v1059, 0.0
    %1066 = vadd.xlane.f32.xlu0 %v1065
    %v1067 = vpop.xlane.xlu0 %1066
    %v1068 = vmul.f32 %v1064, %v914
    %v1069 = vmul.f32 %v1067, %v914
    %v1070 = vsub.f32 %v1058, %v1068
    %v1071 = vsub.f32 %v1059, %v1069
    %v1072 = vmul.f32 %v1070, %v1070
    %v1073 = vmul.f32 %v1071, %v1071
    %v1074 = vsel %vm318, %v1072, 0.0
    %1075 = vadd.xlane.f32.xlu0 %v1074
    %v1076 = vpop.xlane.xlu0 %1075
    %v1077 = vsel %vm318, %v1073, 0.0
    %1078 = vadd.xlane.f32.xlu0 %v1077
    %v1079 = vpop.xlane.xlu0 %1078
    %v1080 = vmul.f32 %v1076, %v914
    %v1081 = vmul.f32 %v1079, %v914
    %v1082 = vadd.f32 %v1080, 1e-05
    %v1083 = vadd.f32 %v1081, 1e-05
    %v1084 = vrsqrt.pop %v1082
    %v1085 = vmul.f32 %v1084, %v1082
    %v1086 = vmul.f32 %v1085, %v1084
    %v1087 = vmul.f32 0.5, %v1086
    %v1088 = vsub.f32 1.5, %v1087
    %v1089 = vmul.f32 %v1084, %v1088
    %vm1090 = vweird.f32 %v1082
    %vm1091 = vweird.f32 %v1084
    %vm1092 = vmor %vm1090, %vm1091
    %v1093 = vsel %vm1092, %v1084, %v1089
    %v1094 = vrsqrt.pop %v1083
    %v1095 = vmul.f32 %v1094, %v1083
    %v1096 = vmul.f32 %v1095, %v1094
    %v1097 = vmul.f32 0.5, %v1096
    %v1098 = vsub.f32 1.5, %v1097
    %v1099 = vmul.f32 %v1094, %v1098
    %vm1100 = vweird.f32 %v1083
    %vm1101 = vweird.f32 %v1094
    %vm1102 = vmor %vm1100, %vm1101
    %v1103 = vsel %vm1102, %v1094, %v1099
    %v1104 = vmul.f32 %v1070, %v1093
    %v1105 = vmul.f32 %v1071, %v1103
    %v1107 = vperm.slane %v1060, 0
    %v1109 = vmul.f32 %v1104, %v1107
    %v1110 = vmul.f32 %v1105, %v1107
    %v1112 = vperm.slane %v1061, 0
    %v1114 = vadd.f32 %v1109, %v1112
    %v1115 = vadd.f32 %v1110, %v1112
    %v1116 = vpack.c.bf16 %v1115, %v1114
    %v1117 = vld [vmem:[#allocation25] sm:$0xf]
    %v1118 = vld [vmem:[#allocation25 + $0x4] sm:$0xf]
    %v1119 = vld [vmem:[#allocation25 + $0x8] sm:$0xf]
    %v1120 = vld [vmem:[#allocation25 + $0xc] sm:$0xf]
    %v1121 = vld [vmem:[#allocation26] sm:$0x1]
    %v1123 = vperm.slane %v1121, 0
    %v1129 = vunpack.c.l.b16 %v1117
    %v1130 = vunpack.c.l.b16 %v1118
    %v1131 = vunpack.c.l.b16 %v1119
    %v1132 = vunpack.c.l.b16 %v1120
    %v1133 = vpack.c.b16 %v1130, %v1129
    %v1134 = vpack.c.b16 %v1132, %v1131
    %v1138 = vsel %vm318, %v1116, 0
    %1140 = vmatpush.bf16.msra.mxu0 0
    %1141 = vmatpush.bf16.msra.mxu0 0
    %1142 = vmatpush.bf16.msra.mxu0 0
    %1143 = vmatpush.bf16.msra.mxu0 0
    %1144 = vmatpush.bf16.msra.mxu0 0
    %1145 = vmatpush.bf16.msra.mxu0 0
    %1146 = vmatpush.bf16.msra.mxu0 %v1134
    %1147 = vmatpush.bf16.msra.mxu0 %v1133
    %1148 = vmatmul.bf16.gmra.mxu0 %v1138
    %v1149 = vpop.f32.mrf.mxu0
    %v1150 = vadd.f32 %v1123, %v1149
    %v1151 = vpop.f32.mrf.mxu0
    %v1152 = vadd.f32 %v1123, %v1151
    %1153 = vdwg.mxu0
    %v1154 = vpack.c.bf16 %v1152, %v1150
    %v1155 = vld [vmem:[%s17] sm:$0xf]
    %v1156 = vld [vmem:[%s17 + $0x4] sm:$0xf]
    %v1157 = vld [vmem:[%s17 + $0x8] sm:$0xf]
    %v1158 = vld [vmem:[%s17 + $0xc] sm:$0xf]
    %v1159 = vld [vmem:[%s17 + $0x10] sm:$0xf]
    %v1160 = vld [vmem:[%s17 + $0x14] sm:$0xf]
    %v1161 = vld [vmem:[%s17 + $0x18] sm:$0xf]
    %v1162 = vld [vmem:[%s17 + $0x1c] sm:$0xf]
    %v1163 = vld [vmem:[%s17 + $0x20] sm:$0xf]
    %v1164 = vld [vmem:[%s17 + $0x24] sm:$0xf]
    %v1165 = vld [vmem:[%s17 + $0x28] sm:$0xf]
    %v1166 = vld [vmem:[%s17 + $0x2c] sm:$0xf]
    %v1167 = vld [vmem:[%s17 + $0x30] sm:$0xf]
    %v1168 = vld [vmem:[%s17 + $0x34] sm:$0xf]
    %v1169 = vld [vmem:[%s17 + $0x38] sm:$0xf]
    %v1170 = vld [vmem:[%s17 + $0x3c] sm:$0xf]
    %v1171 = vld [vmem:[%s18] sm:$0x1]
    %v1173 = vperm.slane %v1171, 0
    %v1191 = vunpack.c.l.b16 %v1155
    %v1192 = vunpack.c.l.b16 %v1156
    %v1193 = vunpack.c.l.b16 %v1157
    %v1194 = vunpack.c.l.b16 %v1158
    %v1195 = vunpack.c.l.b16 %v1159
    %v1196 = vunpack.c.l.b16 %v1160
    %v1197 = vunpack.c.l.b16 %v1161
    %v1198 = vunpack.c.l.b16 %v1162
    %v1199 = vunpack.c.l.b16 %v1163
    %v1200 = vunpack.c.l.b16 %v1164
    %v1201 = vunpack.c.l.b16 %v1165
    %v1202 = vunpack.c.l.b16 %v1166
    %v1203 = vunpack.c.l.b16 %v1167
    %v1204 = vunpack.c.l.b16 %v1168
    %v1205 = vunpack.c.l.b16 %v1169
    %v1206 = vunpack.c.l.b16 %v1170
    %v1207 = vpack.c.b16 %v1192, %v1191
    %v1208 = vpack.c.b16 %v1194, %v1193
    %v1209 = vpack.c.b16 %v1196, %v1195
    %v1210 = vpack.c.b16 %v1198, %v1197
    %v1211 = vpack.c.b16 %v1200, %v1199
    %v1212 = vpack.c.b16 %v1202, %v1201
    %v1213 = vpack.c.b16 %v1204, %v1203
    %v1214 = vpack.c.b16 %v1206, %v1205
    %1223 = vmatpush.bf16.msra.mxu0 %v1214
    %1224 = vmatpush.bf16.msra.mxu0 %v1213
    %1225 = vmatpush.bf16.msra.mxu0 %v1212
    %1226 = vmatpush.bf16.msra.mxu0 %v1211
    %1227 = vmatpush.bf16.msra.mxu0 %v1210
    %1228 = vmatpush.bf16.msra.mxu0 %v1209
    %1229 = vmatpush.bf16.msra.mxu0 %v1208
    %1230 = vmatpush.bf16.msra.mxu0 %v1207
    %1231 = vmatmul.bf16.gmra.mxu0 %v1154
    %v1232 = vpop.f32.mrf.mxu0
    %v1233 = vadd.f32 %v1173, %v1232
    %v1234 = vpop.f32.mrf.mxu0
    %v1235 = vadd.f32 %v1173, %v1234
    %1236 = vdwg.mxu0
    %v1238 = vrot.slane %v1150, 1
    %v1239 = vrot.slane %v1150, 2
    %v1240 = vrot.slane %v1150, 3
    %v1241 = vrot.slane %v1150, 4
    %v1242 = vrot.slane %v1150, 5
    %v1243 = vrot.slane %v1150, 6
    %v1244 = vrot.slane %v1150, 7
    %vm1252 = vcmask 8192
    %1253 = vst.msk [vmem:[%s19] sm:$0x1] %vm1252, %v1150
    %1254 = vst.msk [vmem:[%s19 + $0x2] sm:$0x1] %vm1252, %v1238
    %1255 = vst.msk [vmem:[%s19 + $0x4] sm:$0x1] %vm1252, %v1239
    %1256 = vst.msk [vmem:[%s19 + $0x6] sm:$0x1] %vm1252, %v1240
    %1257 = vst.msk [vmem:[%s19 + $0x8] sm:$0x1] %vm1252, %v1241
    %1258 = vst.msk [vmem:[%s19 + $0xa] sm:$0x1] %vm1252, %v1242
    %1259 = vst.msk [vmem:[%s19 + $0xc] sm:$0x1] %vm1252, %v1243
    %1260 = vst.msk [vmem:[%s19 + $0xe] sm:$0x1] %vm1252, %v1244
    %v1262 = vrot.slane %v1233, 1
    %v1263 = vrot.slane %v1233, 2
    %v1264 = vrot.slane %v1233, 3
    %v1265 = vrot.slane %v1233, 4
    %v1266 = vrot.slane %v1233, 5
    %v1267 = vrot.slane %v1233, 6
    %v1268 = vrot.slane %v1233, 7
    %1276 = vst [vmem:[#allocation28] sm:$0x1] %v1233
    %1277 = vst [vmem:[#allocation28 + $0x2] sm:$0x1] %v1262
    %1278 = vst [vmem:[#allocation28 + $0x4] sm:$0x1] %v1263
    %1279 = vst [vmem:[#allocation28 + $0x6] sm:$0x1] %v1264
    %1280 = vst [vmem:[#allocation28 + $0x8] sm:$0x1] %v1265
    %1281 = vst [vmem:[#allocation28 + $0xa] sm:$0x1] %v1266
    %1282 = vst [vmem:[#allocation28 + $0xc] sm:$0x1] %v1267
    %1283 = vst [vmem:[#allocation28 + $0xe] sm:$0x1] %v1268
    %v1285 = vrot.slane %v1152, 1
    %v1286 = vrot.slane %v1152, 2
    %v1287 = vrot.slane %v1152, 3
    %v1288 = vrot.slane %v1152, 4
    %v1289 = vrot.slane %v1152, 5
    %v1290 = vrot.slane %v1152, 6
    %v1291 = vrot.slane %v1152, 7
    %1299 = vst.msk [vmem:[%s19 + $0x1] sm:$0x1] %vm1252, %v1152
    %1300 = vst.msk [vmem:[%s19 + $0x3] sm:$0x1] %vm1252, %v1285
    %1301 = vst.msk [vmem:[%s19 + $0x5] sm:$0x1] %vm1252, %v1286
    %1302 = vst.msk [vmem:[%s19 + $0x7] sm:$0x1] %vm1252, %v1287
    %1303 = vst.msk [vmem:[%s19 + $0x9] sm:$0x1] %vm1252, %v1288
    %1304 = vst.msk [vmem:[%s19 + $0xb] sm:$0x1] %vm1252, %v1289
    %1305 = vst.msk [vmem:[%s19 + $0xd] sm:$0x1] %vm1252, %v1290
    %1306 = vst.msk [vmem:[%s19 + $0xf] sm:$0x1] %vm1252, %v1291
    %v1308 = vrot.slane %v1235, 1
    %v1309 = vrot.slane %v1235, 2
    %v1310 = vrot.slane %v1235, 3
    %v1311 = vrot.slane %v1235, 4
    %v1312 = vrot.slane %v1235, 5
    %v1313 = vrot.slane %v1235, 6
    %v1314 = vrot.slane %v1235, 7
    %1322 = vst [vmem:[#allocation28 + $0x1] sm:$0x1] %v1235
    %1323 = vst [vmem:[#allocation28 + $0x3] sm:$0x1] %v1308
    %1324 = vst [vmem:[#allocation28 + $0x5] sm:$0x1] %v1309
    %1325 = vst [vmem:[#allocation28 + $0x7] sm:$0x1] %v1310
    %1326 = vst [vmem:[#allocation28 + $0x9] sm:$0x1] %v1311
    %1327 = vst [vmem:[#allocation28 + $0xb] sm:$0x1] %v1312
    %1328 = vst [vmem:[#allocation28 + $0xd] sm:$0x1] %v1313
    %1329 = vst [vmem:[#allocation28 + $0xf] sm:$0x1] %v1314
    // Predicated region
    $region142: #{_fwd.1} parent=1 // pred_check
      _
    $region143: #{_fwd.1} parent=1 // pred_check_branch
      %1331 = sbr.rel (0) target = $region145
    $region144: #{_fwd.1} parent=1 // pred_region
      _
    $region145: #{_fwd.1} parent=1 // pred_fallthru
      _
    // Predicated region
    $region146: #{_fwd.1} parent=1 // pred_check
      _
    $region147: #{_fwd.1} parent=1 // pred_check_branch
      %1333 = sbr.rel (0) target = $region149
    $region148: #{_fwd.1} parent=1 // pred_region
      %1335 = vsyncadd [#allocation4], 0
      %s1336 = sshll.u32 [#allocation28], 4
      %s1337 = int_to_ptr.vmem [resolvable:$true] %s1336
      %s1338 = sshll.u32 %s20, 4
      %s1339 = int_to_ptr.hbm [resolvable:$true] %s1338
      %1344 = dma.vmem_to_hbm [thread:$0]  %s1337, 256, %s1339, [#allocation4], 32, 32, 2
    $region149: #{_fwd.1} parent=1 // pred_fallthru
      _
    // Predicated region
    $region150: #{_fwd.1} parent=1 // pred_check
      _
    $region151: #{_fwd.1} parent=1 // pred_check_branch
      %1346 = sbr.rel (0) target = $region153
    $region152: #{_fwd.1} parent=1 // pred_region
      _
    $region153: #{_fwd.1} parent=1 // pred_fallthru
      _
    // Predicated region
    $region154: #{_fwd.1} parent=1 // pred_check
      _
    $region155: #{_fwd.1} parent=1 // pred_check_branch
      %1348 = sbr.rel (0) target = $region157
    $region156: #{_fwd.1} parent=1 // pred_region
      %1350 = dma.done [#allocation4], 256
    $region157: #{_fwd.1} parent=1 // pred_fallthru
      _
    %1351 = vsyncpa [#allocation3], 1
    %1352 = vsyncpa [#allocation6], 1
    %1353 = vsyncpa [#allocation9], 1
    %1354 = vsyncpa [#allocation12], 1
    %1355 = vsyncpa [#allocation15], 1
    %1356 = vsyncpa [#allocation18], 1
    %1357 = vsyncpa [#allocation21], 1
    %1358 = vsyncpa [#allocation24], 1
    %1359 = vsyncpa [#allocation27], 1
    %1360 = vsyncpa [#allocation4], 1

</llo_original>
